<compile_context>
chip_gen: v6e
topology: v6e:2x2x1
jax: 0.10.0
libtpu: 0.0.40
codegen_flags: <defaults>
</compile_context>

<pallas_src>
import functools

import jax
import jax.numpy as jnp
from jax import lax
from jax.experimental import pallas as pl
from jax.experimental.pallas import tpu as pltpu

EPS = 1e-5      # PyTorch BatchNorm1d default eps
LANE = 128      # lane width; every padded activation / the logit output use it


# --------------------------------------------------------------------------
# Static slab layout (row ranges inside the packed weight / bias slabs)
# --------------------------------------------------------------------------
def _build_layout(align_dim, shared_dim, model_dim, dct_in, text_in):
    wrows = {}
    off = 0

    def add(name, nrows):
        nonlocal off
        wrows[name] = (off, off + nrows)
        off += nrows

    add("dct_proj", dct_in)      # cols 0:D = Wp, col D = folded CLS gate
    add("uni_proj", text_in)     # Space_Encoder stand-in
    add("tu1", shared_dim)
    add("tu2", shared_dim)       # cols 0:D real, rest zero
    add("a1_q", align_dim)       # cols 0:A = Wq*scale, rest zero
    add("a1_kv", align_dim)      # cols 0:A = Wk, A:2A = Wv
    add("a1_o", LANE)            # rows A:2A = Wo, rest zero
    add("a2_q", LANE)            # rows 0:A, cols 0:D = Wq*scale
    add("a2_kv", LANE)           # rows 0:D = [Wk | Wv], rest zero
    add("a2_o", LANE)            # rows D:2D = Wo
    add("mf", LANE)              # rows 0:D, cols 0:D
    add("c1_mf", LANE)           # classifier partials (rows 0:D, cols 0:D)
    add("c1_uni", LANE)
    add("c1_dct", LANE)
    add("c2", LANE)              # rows 0:D, cols 0:2 (lane-dense logits)
    total_w = off

    bias_names = ["dct_proj_b", "uni_proj_b",
                  "tu1_b", "tu1_g", "tu1_beta",
                  "tu2_b", "tu2_g", "tu2_beta",
                  "a1_q_b", "a1_kv_b", "a1_o_b",
                  "a2_q_b", "a2_kv_b", "a2_o_b",
                  "mf_b", "mf_g", "mf_beta",
                  "c1_bias", "c1_g", "c1_beta",
                  "c2_b"]
    brows = {n: i for i, n in enumerate(bias_names)}
    total_b = -(-len(bias_names) // 8) * 8       # pad sublanes to multiple of 8
    return wrows, total_w, brows, total_b


# --------------------------------------------------------------------------
# Fused Pallas kernel: the entire InformationDetection forward pass
# --------------------------------------------------------------------------
def _information_detection_kernel(text_cls_ref, text_align_ref, image_align_ref,
                                  dct_image_ref, w_ref, b_ref, out_ref,
                                  *, wrows, brows, model_dim):
    f32, bf16 = jnp.float32, jnp.bfloat16
    D = model_dim

    def Wv(name):                       # static ref sub-view of the bf16 slab
        r0, r1 = wrows[name]
        return w_ref[r0:r1, :]

    def Bv(name):                       # (1, 128) f32 bias / BN row
        i = brows[name]
        return b_ref[i:i + 1, :]

    def mm(x, name):                    # bf16 MXU inputs, f32 accumulation
        return jnp.dot(x.astype(bf16), Wv(name), preferred_element_type=f32)

    def lin(x, wname, bname):
        return mm(x, wname) + Bv(bname)

    def bn_relu(h, prefix):
        # BatchNorm1d, training-mode batch statistics (biased var), + ReLU.
        mean = jnp.mean(h, axis=0, keepdims=True)
        var = jnp.mean((h - mean) ** 2, axis=0, keepdims=True)
        return jnp.maximum((h - mean) * lax.rsqrt(var + EPS) * Bv(prefix + "_g")
                           + Bv(prefix + "_beta"), 0.0)

    def softmax_last(x):
        m = jnp.max(x, axis=-1, keepdims=True)
        e = jnp.exp(x - m)
        return e * pl.reciprocal(jnp.sum(e, axis=-1, keepdims=True), approx=True)

    def attention(q_in, kv_in, prefix):
        # TODO(synk): Gloabal_MultiHeadAttention definition not provided;
        # single-head scaled-dot-product attention (scale folded into Wq).
        b, sq, dq = q_in.shape
        sk, dk = kv_in.shape[1], kv_in.shape[2]
        q = lin(q_in.reshape(b * sq, dq), prefix + "_q",
                prefix + "_q_b").reshape(b, sq, LANE)
        kv = lin(kv_in.reshape(b * sk, dk), prefix + "_kv",
                 prefix + "_kv_b").reshape(b, sk, LANE)
        # q is zero beyond lane D, so contracting against kv gives q.k only.
        s = jnp.einsum("bqd,bkd->bqk", q.astype(bf16), kv.astype(bf16),
                       preferred_element_type=f32)
        p = softmax_last(s)
        # ctx lanes D:2D hold p @ v; the O weight keeps only those rows.
        ctx = jnp.einsum("bqk,bkd->bqd", p.astype(bf16), kv.astype(bf16),
                         preferred_element_type=f32)
        o = lin(ctx.reshape(b * sq, LANE), prefix + "_o", prefix + "_o_b")
        return o.reshape(b, sq, LANE)

    text_cls = text_cls_ref[...]
    text_align = text_align_ref[...]
    image_align = image_align_ref[...]
    dct_image = dct_image_ref[...]
    B, S, dct_in = dct_image.shape

    # ---- dct_feature, cls_ratio = dct_encoder(dct_image) ----
    # TODO(synk): DCT_Encoder architecture not provided; per-token linear
    # projection + sigmoid CLS gate stand-in (gate folded into output lane D).
    dct_full = lin(dct_image.reshape(B * S, dct_in), "dct_proj",
                   "dct_proj_b").reshape(B, S, LANE)
    dct_cls_full = dct_full[:, 0, :]                              # (B, 128)
    cls_logit = dct_cls_full[:, D:D + 1]                          # (B, 1)
    cls_ratio = pl.reciprocal(1.0 + jnp.exp(-cls_logit), approx=True)

    # ---- global + patch ambiguity -> softmax ratios ----
    # TODO(synk): AmbiguityLearning / PatchLevelKL not provided; per-token
    # symmetric KL of channel-softmaxed features (token 0 == the CLS p2i/i2p
    # term, so cat([p2i, kl_patches]) is exactly the full per-token vector).
    pt = softmax_last(text_align)
    qi = softmax_last(image_align)
    log_pt = jnp.log(pt + 1e-8)
    log_qi = jnp.log(qi + 1e-8)
    kl_ti = jnp.sum(pt * (log_pt - log_qi), axis=-1)              # (B, S)
    kl_it = jnp.sum(qi * (log_qi - log_pt), axis=-1)              # (B, S)
    post_ratio = softmax_last(kl_ti)
    image_ratio = softmax_last(kl_it)
    # TODO(synk): how post_modal_ratio is consumed inside Fushion_layer_1 is
    # unspecified; computed for parity, not applied (compiler DCEs it).
    del post_ratio

    # ---- Modal_Fushion ----
    fushion_img1 = attention(image_align, text_align, "a1")
    fushion_img2 = attention(fushion_img1 * image_ratio[..., None], dct_full, "a2")
    multiple_feature = bn_relu(lin(fushion_img2[:, 0, :], "mf", "mf_b"), "mf")

    # ---- post_shared, _ = uniencoder(text_origin, image_origin) ----
    # TODO(synk): Space_Encoder definition not provided; linear projection of
    # the text CLS token (only the CLS token is consumed downstream).
    post_shared_cls = lin(text_cls, "uni_proj", "uni_proj_b")

    # ---- text_uni MLP ----
    uni_post = bn_relu(lin(post_shared_cls, "tu1", "tu1_b"), "tu1")
    uni_post = bn_relu(lin(uni_post, "tu2", "tu2_b"), "tu2")

    # ---- classifier: cat([mf*cls_ratio, uni_post, dct_cls]) @ W1 expressed
    #      as three partial matmuls fed straight from ref sub-views ----
    h = (mm(multiple_feature * cls_ratio, "c1_mf")
         + mm(uni_post, "c1_uni")
         + mm(dct_cls_full, "c1_dct")
         + Bv("c1_bias"))
    h = bn_relu(h, "c1")

    # lane-dense padded logits (lanes 2..127 of the c2 weights/bias are zero)
    out_ref[...] = lin(h, "c2", "c2_b")


# --------------------------------------------------------------------------
# Wrapper
# --------------------------------------------------------------------------
def information_detection(params, text_origin, image_origin, text_align,
                          image_align, dct_image, sim_matrix=None, *,
                          align_dim=64, shared_dim=128, model_dim=64):
    # TODO(synk): image_origin / sim_matrix are inputs of the reference module
    # but their consumers (Space_Encoder, PatchLevelKL) are undefined; the
    # deterministic stand-ins do not use them.
    del image_origin, sim_matrix
    B = text_origin.shape[0]
    dct_in = dct_image.shape[-1]
    text_in = text_origin.shape[-1]
    wrows, _, brows, _ = _build_layout(align_dim, shared_dim, model_dim,
                                       dct_in, text_in)

    text_cls = text_origin[:, 0, :]        # only the CLS token is consumed

    kernel = functools.partial(_information_detection_kernel,
                               wrows=wrows, brows=brows, model_dim=model_dim)

    vmem = pl.BlockSpec(memory_space=pltpu.MemorySpace.VMEM)
    out = pl.pallas_call(
        kernel,
        out_shape=jax.ShapeDtypeStruct((B, LANE), jnp.float32),
        in_specs=[vmem] * 6,
        out_specs=vmem,
    )(text_cls, text_align, image_align, dct_image, params["w"], params["b"])
    return out[:, :2]


# --------------------------------------------------------------------------
# Parameter initialization (deterministic; PyTorch-Linear-style uniform).
# All weights are packed (pre-transposed, zero-padded / fused / scale-folded)
# into one bf16 weight slab and one f32 bias/BN slab.
# --------------------------------------------------------------------------
def init_params(key, align_dim=64, shared_dim=128, model_dim=64,
                dct_in=64, text_in=128):
    assert 2 * align_dim <= LANE and 2 * model_dim <= LANE
    assert shared_dim <= LANE and text_in <= LANE and dct_in <= LANE

    wrows, total_w, brows, total_b = _build_layout(
        align_dim, shared_dim, model_dim, dct_in, text_in)

    keys = iter(jax.random.split(key, 20))

    def lin(din, dout):
        kw, kb = jax.random.split(next(keys))
        s = 1.0 / float(din) ** 0.5
        return (jax.random.uniform(kw, (din, dout), jnp.float32, -s, s),
                jax.random.uniform(kb, (1, dout), jnp.float32, -s, s))

    W = jnp.zeros((total_w, LANE), jnp.float32)
    Bm = jnp.zeros((total_b, LANE), jnp.float32)

    def putw(name, w, r=0, c=0):
        nonlocal W
        r0, _ = wrows[name]
        W = W.at[r0 + r:r0 + r + w.shape[0], c:c + w.shape[1]].set(w)

    def putb(name, b, c=0):
        nonlocal Bm
        i = brows[name]
        Bm = Bm.at[i:i + 1, c:c + b.shape[1]].set(b)

    D, A = model_dim, align_dim
    scale_a1 = 1.0 / float(A) ** 0.5
    scale_a2 = 1.0 / float(D) ** 0.5

    # DCT_Encoder stand-in: token projection + folded sigmoid CLS gate (lane D)
    wp, bp = lin(dct_in, D)
    wc, bc = lin(D, 1)
    putw("dct_proj", wp)
    putw("dct_proj", wp @ wc, c=D)
    putb("dct_proj_b", bp)
    putb("dct_proj_b", bp @ wc + bc, c=D)

    # Space_Encoder stand-in
    wu, bu = lin(text_in, shared_dim)
    putw("uni_proj", wu); putb("uni_proj_b", bu)

    # text_uni MLP
    w1, b1 = lin(shared_dim, shared_dim)
    putw("tu1", w1); putb("tu1_b", b1)
    putb("tu1_g", jnp.ones((1, shared_dim), jnp.float32))
    w2, b2 = lin(shared_dim, D)
    putw("tu2", w2); putb("tu2_b", b2)
    putb("tu2_g", jnp.ones((1, D), jnp.float32))

    # Modal_Fushion attention 1 (align_dim): Q padded, KV fused, O on v-rows
    wq, bq = lin(A, A); wk, bk = lin(A, A); wv, bv = lin(A, A); wo, bo = lin(A, A)
    putw("a1_q", wq * scale_a1); putb("a1_q_b", bq * scale_a1)
    putw("a1_kv", wk); putw("a1_kv", wv, c=A)
    putb("a1_kv_b", bk); putb("a1_kv_b", bv, c=A)
    putw("a1_o", wo, r=A); putb("a1_o_b", bo)

    # Modal_Fushion attention 2 (model_dim)
    wq, bq = lin(D, D); wk, bk = lin(D, D); wv, bv = lin(D, D); wo, bo = lin(D, D)
    putw("a2_q", wq * scale_a2); putb("a2_q_b", bq * scale_a2)
    putw("a2_kv", wk); putw("a2_kv", wv, c=D)
    putb("a2_kv_b", bk); putb("a2_kv_b", bv, c=D)
    putw("a2_o", wo, r=D); putb("a2_o_b", bo)

    # Modal_Fushion final Linear+BN+ReLU
    wm, bm = lin(D, D)
    putw("mf", wm); putb("mf_b", bm)
    putb("mf_g", jnp.ones((1, D), jnp.float32))

    # classifier
    wc1, bc1 = lin(3 * D, D)
    putw("c1_mf", wc1[:D]); putw("c1_uni", wc1[D:2 * D]); putw("c1_dct", wc1[2 * D:])
    putb("c1_bias", bc1)
    putb("c1_g", jnp.ones((1, D), jnp.float32))
    wc2, bc2 = lin(D, 2)
    putw("c2", wc2); putb("c2_b", bc2)

    return {"w": W.astype(jnp.bfloat16), "b": Bm}


# --------------------------------------------------------------------------
# Main
# --------------------------------------------------------------------------
if __name__ == "__main__":
    B, S, ALIGN, SHARED, MODEL = 2, 8, 64, 128, 64
    S_DCT, DCT_IN, TEXT_IN = 8, 64, 128

    root = jax.random.PRNGKey(0)
    k_par, k_to, k_io, k_ta, k_ia, k_dc, k_sm = jax.random.split(root, 7)

    params = init_params(k_par, align_dim=ALIGN, shared_dim=SHARED,
                         model_dim=MODEL, dct_in=DCT_IN, text_in=TEXT_IN)

    text_origin = jax.random.normal(k_to, (B, S, TEXT_IN), jnp.float32)
    image_origin = jax.random.normal(k_io, (B, S, TEXT_IN), jnp.float32)
    text_align = jax.random.normal(k_ta, (B, S, ALIGN), jnp.float32)
    image_align = jax.random.normal(k_ia, (B, S, ALIGN), jnp.float32)
    dct_image = jax.random.normal(k_dc, (B, S_DCT, DCT_IN), jnp.float32)
    sim_matrix = jax.random.normal(k_sm, (B, S - 1, S - 1), jnp.float32)

    fwd = jax.jit(functools.partial(information_detection, params))
    logits = fwd(text_origin, image_origin, text_align, image_align,
                 dct_image, sim_matrix)
    jax.block_until_ready(logits)
    assert logits.shape == (B, 2)
    print("KERNEL_OK")
</pallas_src>

<mosaic_0001>
module attributes {stable_mosaic.version = 11 : i64} {
  func.func @_information_detection_kernel(%arg0: memref<2x128xf32, #tpu.memory_space<vmem>>, %arg1: memref<2x8x64xf32, #tpu.memory_space<vmem>>, %arg2: memref<2x8x64xf32, #tpu.memory_space<vmem>>, %arg3: memref<2x8x64xf32, #tpu.memory_space<vmem>>, %arg4: memref<1728x128xbf16, #tpu.memory_space<vmem>>, %arg5: memref<24x128xf32, #tpu.memory_space<vmem>>, %arg6: memref<2x128xf32, #tpu.memory_space<vmem>>) attributes {dimension_semantics = [], scalar_prefetch = 0 : i64, scratch_operands = 0 : i64, tpu.core_type = #tpu.core_type<tc>} {
    %c0 = arith.constant 0 : index
    %c0_0 = arith.constant 0 : index
    %0 = vector.load %arg0[%c0, %c0_0] : memref<2x128xf32, #tpu.memory_space<vmem>>, vector<2x128xf32>
    %c0_1 = arith.constant 0 : index
    %c0_2 = arith.constant 0 : index
    %c0_3 = arith.constant 0 : index
    %1 = vector.load %arg1[%c0_1, %c0_2, %c0_3] : memref<2x8x64xf32, #tpu.memory_space<vmem>>, vector<2x8x64xf32>
    %c0_4 = arith.constant 0 : index
    %c0_5 = arith.constant 0 : index
    %c0_6 = arith.constant 0 : index
    %2 = vector.load %arg2[%c0_4, %c0_5, %c0_6] : memref<2x8x64xf32, #tpu.memory_space<vmem>>, vector<2x8x64xf32>
    %c0_7 = arith.constant 0 : index
    %c0_8 = arith.constant 0 : index
    %c0_9 = arith.constant 0 : index
    %3 = vector.load %arg3[%c0_7, %c0_8, %c0_9] : memref<2x8x64xf32, #tpu.memory_space<vmem>>, vector<2x8x64xf32>
    %4 = vector.shape_cast %3 : vector<2x8x64xf32> to vector<16x64xf32>
    %5 = arith.truncf %4 : vector<16x64xf32> to vector<16x64xbf16>
    %c0_10 = arith.constant 0 : index
    %c0_11 = arith.constant 0 : index
    %6 = vector.load %arg4[%c0_10, %c0_11] : memref<1728x128xbf16, #tpu.memory_space<vmem>>, vector<64x128xbf16>
    %cst = arith.constant dense<0.000000e+00> : vector<16x128xf32>
    %7 = tpu.matmul %5, %6, %cst {dimension_numbers = #tpu.dot_dimension_numbers<[1], [0], [0], [1], [0, 0, 1, 1], [], []>} : vector<16x64xbf16>, vector<64x128xbf16>, vector<16x128xf32> -> vector<16x128xf32>
    %c0_12 = arith.constant 0 : index
    %c0_13 = arith.constant 0 : index
    %8 = vector.load %arg5[%c0_12, %c0_13] : memref<24x128xf32, #tpu.memory_space<vmem>>, vector<1x128xf32>
    %9 = vector.broadcast %8 : vector<1x128xf32> to vector<16x128xf32>
    %10 = arith.addf %7, %9 : vector<16x128xf32>
    %11 = vector.shape_cast %10 : vector<16x128xf32> to vector<2x8x128xf32>
    %12 = vector.extract_strided_slice %11 {offsets = [0, 0, 0], sizes = [2, 1, 128], strides = [1, 1, 1]} : vector<2x8x128xf32> to vector<2x1x128xf32>
    %13 = vector.shape_cast %12 : vector<2x1x128xf32> to vector<2x128xf32>
    %14 = vector.extract_strided_slice %13 {offsets = [0, 64], sizes = [2, 1], strides = [1, 1]} : vector<2x128xf32> to vector<2x1xf32>
    %cst_14 = arith.constant 0.000000e+00 : f32
    %15 = vector.broadcast %cst_14 : f32 to vector<2x1xf32>
    %16 = arith.subf %15, %14 : vector<2x1xf32>
    %17 = math.exp %16 : vector<2x1xf32>
    %cst_15 = arith.constant 1.000000e+00 : f32
    %18 = vector.broadcast %cst_15 : f32 to vector<2x1xf32>
    %19 = arith.addf %18, %17 : vector<2x1xf32>
    %20 = tpu.reciprocal %19 {approx = true} : vector<2x1xf32> -> vector<2x1xf32>
    %cst_16 = arith.constant dense<0xFF800000> : vector<2x8xf32>
    %21 = vector.multi_reduction <maximumf>, %1, %cst_16 [2] : vector<2x8x64xf32> to vector<2x8xf32>
    %22 = vector.shape_cast %21 : vector<2x8xf32> to vector<2x8x1xf32>
    %23 = vector.broadcast %22 : vector<2x8x1xf32> to vector<2x8x64xf32>
    %24 = arith.subf %1, %23 : vector<2x8x64xf32>
    %25 = math.exp %24 : vector<2x8x64xf32>
    %cst_17 = arith.constant dense<0.000000e+00> : vector<2x8xf32>
    %26 = vector.multi_reduction <add>, %25, %cst_17 [2] : vector<2x8x64xf32> to vector<2x8xf32>
    %27 = vector.shape_cast %26 : vector<2x8xf32> to vector<2x8x1xf32>
    %28 = tpu.reciprocal %27 {approx = true} : vector<2x8x1xf32> -> vector<2x8x1xf32>
    %29 = vector.broadcast %28 : vector<2x8x1xf32> to vector<2x8x64xf32>
    %30 = arith.mulf %25, %29 : vector<2x8x64xf32>
    %cst_18 = arith.constant dense<0xFF800000> : vector<2x8xf32>
    %31 = vector.multi_reduction <maximumf>, %2, %cst_18 [2] : vector<2x8x64xf32> to vector<2x8xf32>
    %32 = vector.shape_cast %31 : vector<2x8xf32> to vector<2x8x1xf32>
    %33 = vector.broadcast %32 : vector<2x8x1xf32> to vector<2x8x64xf32>
    %34 = arith.subf %2, %33 : vector<2x8x64xf32>
    %35 = math.exp %34 : vector<2x8x64xf32>
    %cst_19 = arith.constant dense<0.000000e+00> : vector<2x8xf32>
    %36 = vector.multi_reduction <add>, %35, %cst_19 [2] : vector<2x8x64xf32> to vector<2x8xf32>
    %37 = vector.shape_cast %36 : vector<2x8xf32> to vector<2x8x1xf32>
    %38 = tpu.reciprocal %37 {approx = true} : vector<2x8x1xf32> -> vector<2x8x1xf32>
    %39 = vector.broadcast %38 : vector<2x8x1xf32> to vector<2x8x64xf32>
    %40 = arith.mulf %35, %39 : vector<2x8x64xf32>
    %cst_20 = arith.constant 9.99999993E-9 : f32
    %41 = vector.broadcast %cst_20 : f32 to vector<2x8x64xf32>
    %42 = arith.addf %30, %41 : vector<2x8x64xf32>
    %43 = math.log %42 : vector<2x8x64xf32>
    %cst_21 = arith.constant 9.99999993E-9 : f32
    %44 = vector.broadcast %cst_21 : f32 to vector<2x8x64xf32>
    %45 = arith.addf %40, %44 : vector<2x8x64xf32>
    %46 = math.log %45 : vector<2x8x64xf32>
    %47 = arith.subf %46, %43 : vector<2x8x64xf32>
    %48 = arith.mulf %40, %47 : vector<2x8x64xf32>
    %cst_22 = arith.constant dense<0.000000e+00> : vector<2x8xf32>
    %49 = vector.multi_reduction <add>, %48, %cst_22 [2] : vector<2x8x64xf32> to vector<2x8xf32>
    %cst_23 = arith.constant dense<0xFF800000> : vector<2xf32>
    %50 = vector.multi_reduction <maximumf>, %49, %cst_23 [1] : vector<2x8xf32> to vector<2xf32>
    %51 = vector.shape_cast %50 : vector<2xf32> to vector<2x1xf32>
    %52 = vector.broadcast %51 : vector<2x1xf32> to vector<2x8xf32>
    %53 = arith.subf %49, %52 : vector<2x8xf32>
    %54 = math.exp %53 : vector<2x8xf32>
    %cst_24 = arith.constant dense<0.000000e+00> : vector<2xf32>
    %55 = vector.multi_reduction <add>, %54, %cst_24 [1] : vector<2x8xf32> to vector<2xf32>
    %56 = vector.shape_cast %55 : vector<2xf32> to vector<2x1xf32>
    %57 = tpu.reciprocal %56 {approx = true} : vector<2x1xf32> -> vector<2x1xf32>
    %58 = vector.broadcast %57 : vector<2x1xf32> to vector<2x8xf32>
    %59 = arith.mulf %54, %58 : vector<2x8xf32>
    %60 = vector.shape_cast %2 : vector<2x8x64xf32> to vector<16x64xf32>
    %61 = arith.truncf %60 : vector<16x64xf32> to vector<16x64xbf16>
    %c448 = arith.constant 448 : index
    %c0_25 = arith.constant 0 : index
    %62 = vector.load %arg4[%c448, %c0_25] : memref<1728x128xbf16, #tpu.memory_space<vmem>>, vector<64x128xbf16>
    %cst_26 = arith.constant dense<0.000000e+00> : vector<16x128xf32>
    %63 = tpu.matmul %61, %62, %cst_26 {dimension_numbers = #tpu.dot_dimension_numbers<[1], [0], [0], [1], [0, 0, 1, 1], [], []>} : vector<16x64xbf16>, vector<64x128xbf16>, vector<16x128xf32> -> vector<16x128xf32>
    %c8 = arith.constant 8 : index
    %c0_27 = arith.constant 0 : index
    %64 = vector.load %arg5[%c8, %c0_27] : memref<24x128xf32, #tpu.memory_space<vmem>>, vector<1x128xf32>
    %65 = vector.broadcast %64 : vector<1x128xf32> to vector<16x128xf32>
    %66 = arith.addf %63, %65 : vector<16x128xf32>
    %67 = vector.shape_cast %66 : vector<16x128xf32> to vector<2x8x128xf32>
    %68 = vector.shape_cast %1 : vector<2x8x64xf32> to vector<16x64xf32>
    %69 = arith.truncf %68 : vector<16x64xf32> to vector<16x64xbf16>
    %c512 = arith.constant 512 : index
    %c0_28 = arith.constant 0 : index
    %70 = vector.load %arg4[%c512, %c0_28] : memref<1728x128xbf16, #tpu.memory_space<vmem>>, vector<64x128xbf16>
    %cst_29 = arith.constant dense<0.000000e+00> : vector<16x128xf32>
    %71 = tpu.matmul %69, %70, %cst_29 {dimension_numbers = #tpu.dot_dimension_numbers<[1], [0], [0], [1], [0, 0, 1, 1], [], []>} : vector<16x64xbf16>, vector<64x128xbf16>, vector<16x128xf32> -> vector<16x128xf32>
    %c9 = arith.constant 9 : index
    %c0_30 = arith.constant 0 : index
    %72 = vector.load %arg5[%c9, %c0_30] : memref<24x128xf32, #tpu.memory_space<vmem>>, vector<1x128xf32>
    %73 = vector.broadcast %72 : vector<1x128xf32> to vector<16x128xf32>
    %74 = arith.addf %71, %73 : vector<16x128xf32>
    %75 = vector.shape_cast %74 : vector<16x128xf32> to vector<2x8x128xf32>
    %76 = arith.truncf %67 : vector<2x8x128xf32> to vector<2x8x128xbf16>
    %77 = arith.truncf %75 : vector<2x8x128xf32> to vector<2x8x128xbf16>
    "tpu.trace_start"() <{level = 10 : i32, message = "bqd,bkd->bqk"}> : () -> ()
    %cst_31 = arith.constant dense<0.000000e+00> : vector<2x8x8xf32>
    %78 = tpu.matmul %76, %77, %cst_31 {dimension_numbers = #tpu.dot_dimension_numbers<[2], [2], [1], [1], [0, 0, 0, 1, 1, 1], [0], [0]>} : vector<2x8x128xbf16>, vector<2x8x128xbf16>, vector<2x8x8xf32> -> vector<2x8x8xf32>
    "tpu.trace_stop"() : () -> ()
    %cst_32 = arith.constant dense<0xFF800000> : vector<2x8xf32>
    %79 = vector.multi_reduction <maximumf>, %78, %cst_32 [2] : vector<2x8x8xf32> to vector<2x8xf32>
    %80 = vector.shape_cast %79 : vector<2x8xf32> to vector<2x8x1xf32>
    %81 = vector.broadcast %80 : vector<2x8x1xf32> to vector<2x8x8xf32>
    %82 = arith.subf %78, %81 : vector<2x8x8xf32>
    %83 = math.exp %82 : vector<2x8x8xf32>
    %cst_33 = arith.constant dense<0.000000e+00> : vector<2x8xf32>
    %84 = vector.multi_reduction <add>, %83, %cst_33 [2] : vector<2x8x8xf32> to vector<2x8xf32>
    %85 = vector.shape_cast %84 : vector<2x8xf32> to vector<2x8x1xf32>
    %86 = tpu.reciprocal %85 {approx = true} : vector<2x8x1xf32> -> vector<2x8x1xf32>
    %87 = vector.broadcast %86 : vector<2x8x1xf32> to vector<2x8x8xf32>
    %88 = arith.mulf %83, %87 : vector<2x8x8xf32>
    %89 = arith.truncf %88 : vector<2x8x8xf32> to vector<2x8x8xbf16>
    %90 = arith.truncf %75 : vector<2x8x128xf32> to vector<2x8x128xbf16>
    "tpu.trace_start"() <{level = 10 : i32, message = "bqk,bkd->bqd"}> : () -> ()
    %cst_34 = arith.constant dense<0.000000e+00> : vector<2x8x128xf32>
    %91 = tpu.matmul %89, %90, %cst_34 {dimension_numbers = #tpu.dot_dimension_numbers<[2], [1], [1], [2], [0, 0, 0, 1, 1, 2], [0], [0]>} : vector<2x8x8xbf16>, vector<2x8x128xbf16>, vector<2x8x128xf32> -> vector<2x8x128xf32>
    "tpu.trace_stop"() : () -> ()
    %92 = vector.shape_cast %91 : vector<2x8x128xf32> to vector<16x128xf32>
    %93 = arith.truncf %92 : vector<16x128xf32> to vector<16x128xbf16>
    %c576 = arith.constant 576 : index
    %c0_35 = arith.constant 0 : index
    %94 = vector.load %arg4[%c576, %c0_35] : memref<1728x128xbf16, #tpu.memory_space<vmem>>, vector<128x128xbf16>
    %cst_36 = arith.constant dense<0.000000e+00> : vector<16x128xf32>
    %95 = tpu.matmul %93, %94, %cst_36 {dimension_numbers = #tpu.dot_dimension_numbers<[1], [0], [0], [1], [0, 0, 1, 1], [], []>} : vector<16x128xbf16>, vector<128x128xbf16>, vector<16x128xf32> -> vector<16x128xf32>
    %c10 = arith.constant 10 : index
    %c0_37 = arith.constant 0 : index
    %96 = vector.load %arg5[%c10, %c0_37] : memref<24x128xf32, #tpu.memory_space<vmem>>, vector<1x128xf32>
    %97 = vector.broadcast %96 : vector<1x128xf32> to vector<16x128xf32>
    %98 = arith.addf %95, %97 : vector<16x128xf32>
    %99 = vector.shape_cast %98 : vector<16x128xf32> to vector<2x8x128xf32>
    %100 = vector.shape_cast %59 : vector<2x8xf32> to vector<2x8x1xf32>
    %101 = vector.broadcast %100 : vector<2x8x1xf32> to vector<2x8x128xf32>
    %102 = arith.mulf %99, %101 : vector<2x8x128xf32>
    %103 = vector.shape_cast %102 : vector<2x8x128xf32> to vector<16x128xf32>
    %104 = arith.truncf %103 : vector<16x128xf32> to vector<16x128xbf16>
    %c704 = arith.constant 704 : index
    %c0_38 = arith.constant 0 : index
    %105 = vector.load %arg4[%c704, %c0_38] : memref<1728x128xbf16, #tpu.memory_space<vmem>>, vector<128x128xbf16>
    %cst_39 = arith.constant dense<0.000000e+00> : vector<16x128xf32>
    %106 = tpu.matmul %104, %105, %cst_39 {dimension_numbers = #tpu.dot_dimension_numbers<[1], [0], [0], [1], [0, 0, 1, 1], [], []>} : vector<16x128xbf16>, vector<128x128xbf16>, vector<16x128xf32> -> vector<16x128xf32>
    %c11 = arith.constant 11 : index
    %c0_40 = arith.constant 0 : index
    %107 = vector.load %arg5[%c11, %c0_40] : memref<24x128xf32, #tpu.memory_space<vmem>>, vector<1x128xf32>
    %108 = vector.broadcast %107 : vector<1x128xf32> to vector<16x128xf32>
    %109 = arith.addf %106, %108 : vector<16x128xf32>
    %110 = vector.shape_cast %109 : vector<16x128xf32> to vector<2x8x128xf32>
    %111 = vector.shape_cast %11 : vector<2x8x128xf32> to vector<16x128xf32>
    %112 = arith.truncf %111 : vector<16x128xf32> to vector<16x128xbf16>
    %c832 = arith.constant 832 : index
    %c0_41 = arith.constant 0 : index
    %113 = vector.load %arg4[%c832, %c0_41] : memref<1728x128xbf16, #tpu.memory_space<vmem>>, vector<128x128xbf16>
    %cst_42 = arith.constant dense<0.000000e+00> : vector<16x128xf32>
    %114 = tpu.matmul %112, %113, %cst_42 {dimension_numbers = #tpu.dot_dimension_numbers<[1], [0], [0], [1], [0, 0, 1, 1], [], []>} : vector<16x128xbf16>, vector<128x128xbf16>, vector<16x128xf32> -> vector<16x128xf32>
    %c12 = arith.constant 12 : index
    %c0_43 = arith.constant 0 : index
    %115 = vector.load %arg5[%c12, %c0_43] : memref<24x128xf32, #tpu.memory_space<vmem>>, vector<1x128xf32>
    %116 = vector.broadcast %115 : vector<1x128xf32> to vector<16x128xf32>
    %117 = arith.addf %114, %116 : vector<16x128xf32>
    %118 = vector.shape_cast %117 : vector<16x128xf32> to vector<2x8x128xf32>
    %119 = arith.truncf %110 : vector<2x8x128xf32> to vector<2x8x128xbf16>
    %120 = arith.truncf %118 : vector<2x8x128xf32> to vector<2x8x128xbf16>
    "tpu.trace_start"() <{level = 10 : i32, message = "bqd,bkd->bqk"}> : () -> ()
    %cst_44 = arith.constant dense<0.000000e+00> : vector<2x8x8xf32>
    %121 = tpu.matmul %119, %120, %cst_44 {dimension_numbers = #tpu.dot_dimension_numbers<[2], [2], [1], [1], [0, 0, 0, 1, 1, 1], [0], [0]>} : vector<2x8x128xbf16>, vector<2x8x128xbf16>, vector<2x8x8xf32> -> vector<2x8x8xf32>
    "tpu.trace_stop"() : () -> ()
    %cst_45 = arith.constant dense<0xFF800000> : vector<2x8xf32>
    %122 = vector.multi_reduction <maximumf>, %121, %cst_45 [2] : vector<2x8x8xf32> to vector<2x8xf32>
    %123 = vector.shape_cast %122 : vector<2x8xf32> to vector<2x8x1xf32>
    %124 = vector.broadcast %123 : vector<2x8x1xf32> to vector<2x8x8xf32>
    %125 = arith.subf %121, %124 : vector<2x8x8xf32>
    %126 = math.exp %125 : vector<2x8x8xf32>
    %cst_46 = arith.constant dense<0.000000e+00> : vector<2x8xf32>
    %127 = vector.multi_reduction <add>, %126, %cst_46 [2] : vector<2x8x8xf32> to vector<2x8xf32>
    %128 = vector.shape_cast %127 : vector<2x8xf32> to vector<2x8x1xf32>
    %129 = tpu.reciprocal %128 {approx = true} : vector<2x8x1xf32> -> vector<2x8x1xf32>
    %130 = vector.broadcast %129 : vector<2x8x1xf32> to vector<2x8x8xf32>
    %131 = arith.mulf %126, %130 : vector<2x8x8xf32>
    %132 = arith.truncf %131 : vector<2x8x8xf32> to vector<2x8x8xbf16>
    %133 = arith.truncf %118 : vector<2x8x128xf32> to vector<2x8x128xbf16>
    "tpu.trace_start"() <{level = 10 : i32, message = "bqk,bkd->bqd"}> : () -> ()
    %cst_47 = arith.constant dense<0.000000e+00> : vector<2x8x128xf32>
    %134 = tpu.matmul %132, %133, %cst_47 {dimension_numbers = #tpu.dot_dimension_numbers<[2], [1], [1], [2], [0, 0, 0, 1, 1, 2], [0], [0]>} : vector<2x8x8xbf16>, vector<2x8x128xbf16>, vector<2x8x128xf32> -> vector<2x8x128xf32>
    "tpu.trace_stop"() : () -> ()
    %135 = vector.shape_cast %134 : vector<2x8x128xf32> to vector<16x128xf32>
    %136 = arith.truncf %135 : vector<16x128xf32> to vector<16x128xbf16>
    %c960 = arith.constant 960 : index
    %c0_48 = arith.constant 0 : index
    %137 = vector.load %arg4[%c960, %c0_48] : memref<1728x128xbf16, #tpu.memory_space<vmem>>, vector<128x128xbf16>
    %cst_49 = arith.constant dense<0.000000e+00> : vector<16x128xf32>
    %138 = tpu.matmul %136, %137, %cst_49 {dimension_numbers = #tpu.dot_dimension_numbers<[1], [0], [0], [1], [0, 0, 1, 1], [], []>} : vector<16x128xbf16>, vector<128x128xbf16>, vector<16x128xf32> -> vector<16x128xf32>
    %c13 = arith.constant 13 : index
    %c0_50 = arith.constant 0 : index
    %139 = vector.load %arg5[%c13, %c0_50] : memref<24x128xf32, #tpu.memory_space<vmem>>, vector<1x128xf32>
    %140 = vector.broadcast %139 : vector<1x128xf32> to vector<16x128xf32>
    %141 = arith.addf %138, %140 : vector<16x128xf32>
    %142 = vector.shape_cast %141 : vector<16x128xf32> to vector<2x8x128xf32>
    %143 = vector.extract_strided_slice %142 {offsets = [0, 0, 0], sizes = [2, 1, 128], strides = [1, 1, 1]} : vector<2x8x128xf32> to vector<2x1x128xf32>
    %144 = vector.shape_cast %143 : vector<2x1x128xf32> to vector<2x128xf32>
    %145 = arith.truncf %144 : vector<2x128xf32> to vector<2x128xbf16>
    %c1088 = arith.constant 1088 : index
    %c0_51 = arith.constant 0 : index
    %146 = vector.load %arg4[%c1088, %c0_51] : memref<1728x128xbf16, #tpu.memory_space<vmem>>, vector<128x128xbf16>
    %cst_52 = arith.constant dense<0.000000e+00> : vector<2x128xf32>
    %147 = tpu.matmul %145, %146, %cst_52 {dimension_numbers = #tpu.dot_dimension_numbers<[1], [0], [0], [1], [0, 0, 1, 1], [], []>} : vector<2x128xbf16>, vector<128x128xbf16>, vector<2x128xf32> -> vector<2x128xf32>
    %c14 = arith.constant 14 : index
    %c0_53 = arith.constant 0 : index
    %148 = vector.load %arg5[%c14, %c0_53] : memref<24x128xf32, #tpu.memory_space<vmem>>, vector<1x128xf32>
    %149 = vector.broadcast %148 : vector<1x128xf32> to vector<2x128xf32>
    %150 = arith.addf %147, %149 : vector<2x128xf32>
    %cst_54 = arith.constant dense<0.000000e+00> : vector<128xf32>
    %151 = vector.multi_reduction <add>, %150, %cst_54 [0] : vector<2x128xf32> to vector<128xf32>
    %152 = vector.shape_cast %151 : vector<128xf32> to vector<1x128xf32>
    %cst_55 = arith.constant 2.000000e+00 : f32
    %153 = vector.broadcast %cst_55 : f32 to vector<1x128xf32>
    %154 = arith.divf %152, %153 : vector<1x128xf32>
    %155 = vector.broadcast %154 : vector<1x128xf32> to vector<2x128xf32>
    %156 = arith.subf %150, %155 : vector<2x128xf32>
    %157 = arith.mulf %156, %156 : vector<2x128xf32>
    %cst_56 = arith.constant dense<0.000000e+00> : vector<128xf32>
    %158 = vector.multi_reduction <add>, %157, %cst_56 [0] : vector<2x128xf32> to vector<128xf32>
    %159 = vector.shape_cast %158 : vector<128xf32> to vector<1x128xf32>
    %cst_57 = arith.constant 2.000000e+00 : f32
    %160 = vector.broadcast %cst_57 : f32 to vector<1x128xf32>
    %161 = arith.divf %159, %160 : vector<1x128xf32>
    %162 = vector.broadcast %154 : vector<1x128xf32> to vector<2x128xf32>
    %163 = arith.subf %150, %162 : vector<2x128xf32>
    %cst_58 = arith.constant 9.99999974E-6 : f32
    %164 = vector.broadcast %cst_58 : f32 to vector<1x128xf32>
    %165 = arith.addf %161, %164 : vector<1x128xf32>
    %166 = math.rsqrt %165 : vector<1x128xf32>
    %167 = vector.broadcast %166 : vector<1x128xf32> to vector<2x128xf32>
    %168 = arith.mulf %163, %167 : vector<2x128xf32>
    %c15 = arith.constant 15 : index
    %c0_59 = arith.constant 0 : index
    %169 = vector.load %arg5[%c15, %c0_59] : memref<24x128xf32, #tpu.memory_space<vmem>>, vector<1x128xf32>
    %170 = vector.broadcast %169 : vector<1x128xf32> to vector<2x128xf32>
    %171 = arith.mulf %168, %170 : vector<2x128xf32>
    %c16 = arith.constant 16 : index
    %c0_60 = arith.constant 0 : index
    %172 = vector.load %arg5[%c16, %c0_60] : memref<24x128xf32, #tpu.memory_space<vmem>>, vector<1x128xf32>
    %173 = vector.broadcast %172 : vector<1x128xf32> to vector<2x128xf32>
    %174 = arith.addf %171, %173 : vector<2x128xf32>
    %cst_61 = arith.constant 0.000000e+00 : f32
    %175 = vector.broadcast %cst_61 : f32 to vector<2x128xf32>
    %176 = arith.maximumf %174, %175 : vector<2x128xf32>
    %177 = arith.truncf %0 : vector<2x128xf32> to vector<2x128xbf16>
    %c64 = arith.constant 64 : index
    %c0_62 = arith.constant 0 : index
    %178 = vector.load %arg4[%c64, %c0_62] : memref<1728x128xbf16, #tpu.memory_space<vmem>>, vector<128x128xbf16>
    %cst_63 = arith.constant dense<0.000000e+00> : vector<2x128xf32>
    %179 = tpu.matmul %177, %178, %cst_63 {dimension_numbers = #tpu.dot_dimension_numbers<[1], [0], [0], [1], [0, 0, 1, 1], [], []>} : vector<2x128xbf16>, vector<128x128xbf16>, vector<2x128xf32> -> vector<2x128xf32>
    %c1 = arith.constant 1 : index
    %c0_64 = arith.constant 0 : index
    %180 = vector.load %arg5[%c1, %c0_64] : memref<24x128xf32, #tpu.memory_space<vmem>>, vector<1x128xf32>
    %181 = vector.broadcast %180 : vector<1x128xf32> to vector<2x128xf32>
    %182 = arith.addf %179, %181 : vector<2x128xf32>
    %183 = arith.truncf %182 : vector<2x128xf32> to vector<2x128xbf16>
    %c192 = arith.constant 192 : index
    %c0_65 = arith.constant 0 : index
    %184 = vector.load %arg4[%c192, %c0_65] : memref<1728x128xbf16, #tpu.memory_space<vmem>>, vector<128x128xbf16>
    %cst_66 = arith.constant dense<0.000000e+00> : vector<2x128xf32>
    %185 = tpu.matmul %183, %184, %cst_66 {dimension_numbers = #tpu.dot_dimension_numbers<[1], [0], [0], [1], [0, 0, 1, 1], [], []>} : vector<2x128xbf16>, vector<128x128xbf16>, vector<2x128xf32> -> vector<2x128xf32>
    %c2 = arith.constant 2 : index
    %c0_67 = arith.constant 0 : index
    %186 = vector.load %arg5[%c2, %c0_67] : memref<24x128xf32, #tpu.memory_space<vmem>>, vector<1x128xf32>
    %187 = vector.broadcast %186 : vector<1x128xf32> to vector<2x128xf32>
    %188 = arith.addf %185, %187 : vector<2x128xf32>
    %cst_68 = arith.constant dense<0.000000e+00> : vector<128xf32>
    %189 = vector.multi_reduction <add>, %188, %cst_68 [0] : vector<2x128xf32> to vector<128xf32>
    %190 = vector.shape_cast %189 : vector<128xf32> to vector<1x128xf32>
    %cst_69 = arith.constant 2.000000e+00 : f32
    %191 = vector.broadcast %cst_69 : f32 to vector<1x128xf32>
    %192 = arith.divf %190, %191 : vector<1x128xf32>
    %193 = vector.broadcast %192 : vector<1x128xf32> to vector<2x128xf32>
    %194 = arith.subf %188, %193 : vector<2x128xf32>
    %195 = arith.mulf %194, %194 : vector<2x128xf32>
    %cst_70 = arith.constant dense<0.000000e+00> : vector<128xf32>
    %196 = vector.multi_reduction <add>, %195, %cst_70 [0] : vector<2x128xf32> to vector<128xf32>
    %197 = vector.shape_cast %196 : vector<128xf32> to vector<1x128xf32>
    %cst_71 = arith.constant 2.000000e+00 : f32
    %198 = vector.broadcast %cst_71 : f32 to vector<1x128xf32>
    %199 = arith.divf %197, %198 : vector<1x128xf32>
    %200 = vector.broadcast %192 : vector<1x128xf32> to vector<2x128xf32>
    %201 = arith.subf %188, %200 : vector<2x128xf32>
    %cst_72 = arith.constant 9.99999974E-6 : f32
    %202 = vector.broadcast %cst_72 : f32 to vector<1x128xf32>
    %203 = arith.addf %199, %202 : vector<1x128xf32>
    %204 = math.rsqrt %203 : vector<1x128xf32>
    %205 = vector.broadcast %204 : vector<1x128xf32> to vector<2x128xf32>
    %206 = arith.mulf %201, %205 : vector<2x128xf32>
    %c3 = arith.constant 3 : index
    %c0_73 = arith.constant 0 : index
    %207 = vector.load %arg5[%c3, %c0_73] : memref<24x128xf32, #tpu.memory_space<vmem>>, vector<1x128xf32>
    %208 = vector.broadcast %207 : vector<1x128xf32> to vector<2x128xf32>
    %209 = arith.mulf %206, %208 : vector<2x128xf32>
    %c4 = arith.constant 4 : index
    %c0_74 = arith.constant 0 : index
    %210 = vector.load %arg5[%c4, %c0_74] : memref<24x128xf32, #tpu.memory_space<vmem>>, vector<1x128xf32>
    %211 = vector.broadcast %210 : vector<1x128xf32> to vector<2x128xf32>
    %212 = arith.addf %209, %211 : vector<2x128xf32>
    %cst_75 = arith.constant 0.000000e+00 : f32
    %213 = vector.broadcast %cst_75 : f32 to vector<2x128xf32>
    %214 = arith.maximumf %212, %213 : vector<2x128xf32>
    %215 = arith.truncf %214 : vector<2x128xf32> to vector<2x128xbf16>
    %c320 = arith.constant 320 : index
    %c0_76 = arith.constant 0 : index
    %216 = vector.load %arg4[%c320, %c0_76] : memref<1728x128xbf16, #tpu.memory_space<vmem>>, vector<128x128xbf16>
    %cst_77 = arith.constant dense<0.000000e+00> : vector<2x128xf32>
    %217 = tpu.matmul %215, %216, %cst_77 {dimension_numbers = #tpu.dot_dimension_numbers<[1], [0], [0], [1], [0, 0, 1, 1], [], []>} : vector<2x128xbf16>, vector<128x128xbf16>, vector<2x128xf32> -> vector<2x128xf32>
    %c5 = arith.constant 5 : index
    %c0_78 = arith.constant 0 : index
    %218 = vector.load %arg5[%c5, %c0_78] : memref<24x128xf32, #tpu.memory_space<vmem>>, vector<1x128xf32>
    %219 = vector.broadcast %218 : vector<1x128xf32> to vector<2x128xf32>
    %220 = arith.addf %217, %219 : vector<2x128xf32>
    %cst_79 = arith.constant dense<0.000000e+00> : vector<128xf32>
    %221 = vector.multi_reduction <add>, %220, %cst_79 [0] : vector<2x128xf32> to vector<128xf32>
    %222 = vector.shape_cast %221 : vector<128xf32> to vector<1x128xf32>
    %cst_80 = arith.constant 2.000000e+00 : f32
    %223 = vector.broadcast %cst_80 : f32 to vector<1x128xf32>
    %224 = arith.divf %222, %223 : vector<1x128xf32>
    %225 = vector.broadcast %224 : vector<1x128xf32> to vector<2x128xf32>
    %226 = arith.subf %220, %225 : vector<2x128xf32>
    %227 = arith.mulf %226, %226 : vector<2x128xf32>
    %cst_81 = arith.constant dense<0.000000e+00> : vector<128xf32>
    %228 = vector.multi_reduction <add>, %227, %cst_81 [0] : vector<2x128xf32> to vector<128xf32>
    %229 = vector.shape_cast %228 : vector<128xf32> to vector<1x128xf32>
    %cst_82 = arith.constant 2.000000e+00 : f32
    %230 = vector.broadcast %cst_82 : f32 to vector<1x128xf32>
    %231 = arith.divf %229, %230 : vector<1x128xf32>
    %232 = vector.broadcast %224 : vector<1x128xf32> to vector<2x128xf32>
    %233 = arith.subf %220, %232 : vector<2x128xf32>
    %cst_83 = arith.constant 9.99999974E-6 : f32
    %234 = vector.broadcast %cst_83 : f32 to vector<1x128xf32>
    %235 = arith.addf %231, %234 : vector<1x128xf32>
    %236 = math.rsqrt %235 : vector<1x128xf32>
    %237 = vector.broadcast %236 : vector<1x128xf32> to vector<2x128xf32>
    %238 = arith.mulf %233, %237 : vector<2x128xf32>
    %c6 = arith.constant 6 : index
    %c0_84 = arith.constant 0 : index
    %239 = vector.load %arg5[%c6, %c0_84] : memref<24x128xf32, #tpu.memory_space<vmem>>, vector<1x128xf32>
    %240 = vector.broadcast %239 : vector<1x128xf32> to vector<2x128xf32>
    %241 = arith.mulf %238, %240 : vector<2x128xf32>
    %c7 = arith.constant 7 : index
    %c0_85 = arith.constant 0 : index
    %242 = vector.load %arg5[%c7, %c0_85] : memref<24x128xf32, #tpu.memory_space<vmem>>, vector<1x128xf32>
    %243 = vector.broadcast %242 : vector<1x128xf32> to vector<2x128xf32>
    %244 = arith.addf %241, %243 : vector<2x128xf32>
    %cst_86 = arith.constant 0.000000e+00 : f32
    %245 = vector.broadcast %cst_86 : f32 to vector<2x128xf32>
    %246 = arith.maximumf %244, %245 : vector<2x128xf32>
    %247 = vector.broadcast %20 : vector<2x1xf32> to vector<2x128xf32>
    %248 = arith.mulf %176, %247 : vector<2x128xf32>
    %249 = arith.truncf %248 : vector<2x128xf32> to vector<2x128xbf16>
    %c1216 = arith.constant 1216 : index
    %c0_87 = arith.constant 0 : index
    %250 = vector.load %arg4[%c1216, %c0_87] : memref<1728x128xbf16, #tpu.memory_space<vmem>>, vector<128x128xbf16>
    %cst_88 = arith.constant dense<0.000000e+00> : vector<2x128xf32>
    %251 = tpu.matmul %249, %250, %cst_88 {dimension_numbers = #tpu.dot_dimension_numbers<[1], [0], [0], [1], [0, 0, 1, 1], [], []>} : vector<2x128xbf16>, vector<128x128xbf16>, vector<2x128xf32> -> vector<2x128xf32>
    %252 = arith.truncf %246 : vector<2x128xf32> to vector<2x128xbf16>
    %c1344 = arith.constant 1344 : index
    %c0_89 = arith.constant 0 : index
    %253 = vector.load %arg4[%c1344, %c0_89] : memref<1728x128xbf16, #tpu.memory_space<vmem>>, vector<128x128xbf16>
    %cst_90 = arith.constant dense<0.000000e+00> : vector<2x128xf32>
    %254 = tpu.matmul %252, %253, %cst_90 {dimension_numbers = #tpu.dot_dimension_numbers<[1], [0], [0], [1], [0, 0, 1, 1], [], []>} : vector<2x128xbf16>, vector<128x128xbf16>, vector<2x128xf32> -> vector<2x128xf32>
    %255 = arith.addf %251, %254 : vector<2x128xf32>
    %256 = arith.truncf %13 : vector<2x128xf32> to vector<2x128xbf16>
    %c1472 = arith.constant 1472 : index
    %c0_91 = arith.constant 0 : index
    %257 = vector.load %arg4[%c1472, %c0_91] : memref<1728x128xbf16, #tpu.memory_space<vmem>>, vector<128x128xbf16>
    %cst_92 = arith.constant dense<0.000000e+00> : vector<2x128xf32>
    %258 = tpu.matmul %256, %257, %cst_92 {dimension_numbers = #tpu.dot_dimension_numbers<[1], [0], [0], [1], [0, 0, 1, 1], [], []>} : vector<2x128xbf16>, vector<128x128xbf16>, vector<2x128xf32> -> vector<2x128xf32>
    %259 = arith.addf %255, %258 : vector<2x128xf32>
    %c17 = arith.constant 17 : index
    %c0_93 = arith.constant 0 : index
    %260 = vector.load %arg5[%c17, %c0_93] : memref<24x128xf32, #tpu.memory_space<vmem>>, vector<1x128xf32>
    %261 = vector.broadcast %260 : vector<1x128xf32> to vector<2x128xf32>
    %262 = arith.addf %259, %261 : vector<2x128xf32>
    %cst_94 = arith.constant dense<0.000000e+00> : vector<128xf32>
    %263 = vector.multi_reduction <add>, %262, %cst_94 [0] : vector<2x128xf32> to vector<128xf32>
    %264 = vector.shape_cast %263 : vector<128xf32> to vector<1x128xf32>
    %cst_95 = arith.constant 2.000000e+00 : f32
    %265 = vector.broadcast %cst_95 : f32 to vector<1x128xf32>
    %266 = arith.divf %264, %265 : vector<1x128xf32>
    %267 = vector.broadcast %266 : vector<1x128xf32> to vector<2x128xf32>
    %268 = arith.subf %262, %267 : vector<2x128xf32>
    %269 = arith.mulf %268, %268 : vector<2x128xf32>
    %cst_96 = arith.constant dense<0.000000e+00> : vector<128xf32>
    %270 = vector.multi_reduction <add>, %269, %cst_96 [0] : vector<2x128xf32> to vector<128xf32>
    %271 = vector.shape_cast %270 : vector<128xf32> to vector<1x128xf32>
    %cst_97 = arith.constant 2.000000e+00 : f32
    %272 = vector.broadcast %cst_97 : f32 to vector<1x128xf32>
    %273 = arith.divf %271, %272 : vector<1x128xf32>
    %274 = vector.broadcast %266 : vector<1x128xf32> to vector<2x128xf32>
    %275 = arith.subf %262, %274 : vector<2x128xf32>
    %cst_98 = arith.constant 9.99999974E-6 : f32
    %276 = vector.broadcast %cst_98 : f32 to vector<1x128xf32>
    %277 = arith.addf %273, %276 : vector<1x128xf32>
    %278 = math.rsqrt %277 : vector<1x128xf32>
    %279 = vector.broadcast %278 : vector<1x128xf32> to vector<2x128xf32>
    %280 = arith.mulf %275, %279 : vector<2x128xf32>
    %c18 = arith.constant 18 : index
    %c0_99 = arith.constant 0 : index
    %281 = vector.load %arg5[%c18, %c0_99] : memref<24x128xf32, #tpu.memory_space<vmem>>, vector<1x128xf32>
    %282 = vector.broadcast %281 : vector<1x128xf32> to vector<2x128xf32>
    %283 = arith.mulf %280, %282 : vector<2x128xf32>
    %c19 = arith.constant 19 : index
    %c0_100 = arith.constant 0 : index
    %284 = vector.load %arg5[%c19, %c0_100] : memref<24x128xf32, #tpu.memory_space<vmem>>, vector<1x128xf32>
    %285 = vector.broadcast %284 : vector<1x128xf32> to vector<2x128xf32>
    %286 = arith.addf %283, %285 : vector<2x128xf32>
    %cst_101 = arith.constant 0.000000e+00 : f32
    %287 = vector.broadcast %cst_101 : f32 to vector<2x128xf32>
    %288 = arith.maximumf %286, %287 : vector<2x128xf32>
    %289 = arith.truncf %288 : vector<2x128xf32> to vector<2x128xbf16>
    %c1600 = arith.constant 1600 : index
    %c0_102 = arith.constant 0 : index
    %290 = vector.load %arg4[%c1600, %c0_102] : memref<1728x128xbf16, #tpu.memory_space<vmem>>, vector<128x128xbf16>
    %cst_103 = arith.constant dense<0.000000e+00> : vector<2x128xf32>
    %291 = tpu.matmul %289, %290, %cst_103 {dimension_numbers = #tpu.dot_dimension_numbers<[1], [0], [0], [1], [0, 0, 1, 1], [], []>} : vector<2x128xbf16>, vector<128x128xbf16>, vector<2x128xf32> -> vector<2x128xf32>
    %c20 = arith.constant 20 : index
    %c0_104 = arith.constant 0 : index
    %292 = vector.load %arg5[%c20, %c0_104] : memref<24x128xf32, #tpu.memory_space<vmem>>, vector<1x128xf32>
    %293 = vector.broadcast %292 : vector<1x128xf32> to vector<2x128xf32>
    %294 = arith.addf %291, %293 : vector<2x128xf32>
    %c0_105 = arith.constant 0 : index
    %c0_106 = arith.constant 0 : index
    %295 = vector.load %arg6[%c0_105, %c0_106] : memref<2x128xf32, #tpu.memory_space<vmem>>, vector<2x128xf32>
    tpu.vector_store %arg6[%c0_105, %c0_106], %294 {strides = array<i32>} : memref<2x128xf32, #tpu.memory_space<vmem>>, vector<2x128xf32>,
    return
  }
}

</mosaic_0001>

<llo_original>
// kernel: information_detection.1
$region0: #{information_detection.1}
  #allocation0 [shape = 'u32[]', space=smem, size = 0x4, offset = 0x4, fixed_abs, tag = 'smem constant byte address 0x4 - core index']
  #allocation1 [shape = 'u32[144,128]{1,0:T(1,128)}', space=vmem, size = 0x12000, scoped, tag = 'internal scratch']
  %s0 = inlined_call_operand.vmem [shape: f32[2,128], index: 0, kind: input, shape index: {}]
  %s1 = inlined_call_operand.hbm [shape: f32[2,8,64], index: 1, kind: input, shape index: {}]
  %s2 = inlined_call_operand.hbm [shape: f32[2,8,64], index: 2, kind: input, shape index: {}]
  %s3 = inlined_call_operand.hbm [shape: f32[2,8,64], index: 3, kind: input, shape index: {}]
  %s4 = inlined_call_operand.hbm [shape: bf16[1728,128], index: 4, kind: input, shape index: {}]
  %s5 = inlined_call_operand.hbm [shape: f32[24,128], index: 5, kind: input, shape index: {}]
  %s6 = inlined_call_operand.hbm [shape: f32[2,128], index: 6, kind: output, shape index: {}]
  %s7 = sld [smem:[#allocation0]]
  $region54: #{information_detection.1} parent=0
    _
  %s9 = ssub.s32 1, %s7
  %s10 = scalar_select 0, %s9, %s7
  $region1: #{information_detection.1} parent=0
    #allocation2 [shape = 'u8[8192]{0}', space=vmem, size = 0x2000, scoped, tag = 'input window, operand 1, single buffered']
    #allocation3 [shape = 's32[1]{0}', space=sflag, size = 0x4, scoped, tag = 'scoped memory for information_detection.1']
    #allocation4 [shape = 's32[1]{0}', space=sflag, size = 0x4, scoped, tag = 'scoped memory for information_detection.1']
    #allocation5 [shape = 'u8[8192]{0}', space=vmem, size = 0x2000, scoped, tag = 'input window, operand 2, single buffered']
    #allocation6 [shape = 's32[1]{0}', space=sflag, size = 0x4, scoped, tag = 'scoped memory for information_detection.1']
    #allocation7 [shape = 'u8[8192]{0}', space=vmem, size = 0x2000, scoped, tag = 'input window, operand 3, single buffered']
    #allocation8 [shape = 'u8[442368]{0}', space=vmem, size = 0x6c000, scoped, tag = 'input window, operand 4, single buffered']
    #allocation9 [shape = 's32[1]{0}', space=sflag, size = 0x4, scoped, tag = 'scoped memory for information_detection.1']
    #allocation10 [shape = 'u8[12288]{0}', space=vmem, size = 0x3000, scoped, tag = 'input window, operand 5, single buffered']
    #allocation11 [shape = 'u8[1024]{0}', space=vmem, size = 0x400, scoped, tag = 'output window, operand 0, single buffered']
    %11 = vsyncpa [#allocation3], 0
    %12 = vsyncpa [#allocation6], 0
    %13 = vsyncpa [#allocation9], 0
    %14 = vsyncpa [#allocation4], 0
    // Predicated region
    $region2: #{information_detection.1} parent=1 // pred_check
      _
    $region3: #{information_detection.1} parent=1 // pred_check_branch
      %16 = sbr.rel (0) target = $region5
    $region4: #{information_detection.1} parent=1 // pred_region
      _
    $region5: #{information_detection.1} parent=1 // pred_fallthru
      _
    // Predicated region
    $region6: #{information_detection.1} parent=1 // pred_check
      _
    $region7: #{information_detection.1} parent=1 // pred_check_branch
      %18 = sbr.rel (0) target = $region9
    $region8: #{information_detection.1} parent=1 // pred_region
      %s20 = ssub.s32 256, 256
      %21 = vsyncadd [#allocation3], %s20
      %s22 = sshll.u32 [#allocation2], 4
      %s23 = int_to_ptr.vmem [resolvable:$true] %s22
      %28 = dma.hbm_to_vmem [thread:$0]  %s1, 256, %s23, [#allocation3], 128, 128, 8
    $region9: #{information_detection.1} parent=1 // pred_fallthru
      _
    // Predicated region
    $region10: #{information_detection.1} parent=1 // pred_check
      _
    $region11: #{information_detection.1} parent=1 // pred_check_branch
      %30 = sbr.rel (0) target = $region13
    $region12: #{information_detection.1} parent=1 // pred_region
      %s32 = ssub.s32 256, 256
      %33 = vsyncadd [#allocation6], %s32
      %s34 = sshll.u32 [#allocation5], 4
      %s35 = int_to_ptr.vmem [resolvable:$true] %s34
      %40 = dma.hbm_to_vmem [thread:$0]  %s2, 256, %s35, [#allocation6], 128, 128, 8
    $region13: #{information_detection.1} parent=1 // pred_fallthru
      _
    // Predicated region
    $region14: #{information_detection.1} parent=1 // pred_check
      _
    $region15: #{information_detection.1} parent=1 // pred_check_branch
      %42 = sbr.rel (0) target = $region17
    $region16: #{information_detection.1} parent=1 // pred_region
      %s44 = ssub.s32 256, 256
      %45 = vsyncadd [#allocation6], %s44
      %s46 = sshll.u32 [#allocation7], 4
      %s47 = int_to_ptr.vmem [resolvable:$true] %s46
      %52 = dma.hbm_to_vmem [thread:$0]  %s3, 256, %s47, [#allocation6], 128, 128, 8
    $region17: #{information_detection.1} parent=1 // pred_fallthru
      _
    // Predicated region
    $region18: #{information_detection.1} parent=1 // pred_check
      _
    $region19: #{information_detection.1} parent=1 // pred_check_branch
      %54 = sbr.rel (0) target = $region21
    $region20: #{information_detection.1} parent=1 // pred_region
      %s56 = ssub.s32 13824, 13824
      %57 = vsyncadd [#allocation9], %s56
      %s58 = sshll.u32 [#allocation8], 4
      %s59 = int_to_ptr.vmem [resolvable:$true] %s58
      %64 = dma.hbm_to_vmem [thread:$0]  %s4, 13824, %s59, [#allocation9], 64, 64, 4
    $region21: #{information_detection.1} parent=1 // pred_fallthru
      _
    // Predicated region
    $region22: #{information_detection.1} parent=1 // pred_check
      _
    $region23: #{information_detection.1} parent=1 // pred_check_branch
      %66 = sbr.rel (0) target = $region25
    $region24: #{information_detection.1} parent=1 // pred_region
      %s68 = ssub.s32 384, 384
      %69 = vsyncadd [#allocation9], %s68
      %s70 = sshll.u32 [#allocation10], 4
      %s71 = int_to_ptr.vmem [resolvable:$true] %s70
      %76 = dma.hbm_to_vmem [thread:$0]  %s5, 384, %s71, [#allocation9], 128, 128, 8
    $region25: #{information_detection.1} parent=1 // pred_fallthru
      _
    // Predicated region
    $region26: #{information_detection.1} parent=1 // pred_check
      _
    $region27: #{information_detection.1} parent=1 // pred_check_branch
      %78 = sbr.rel (0) target = $region29
    $region28: #{information_detection.1} parent=1 // pred_region
      %79 = dma.done [#allocation3], 256
    $region29: #{information_detection.1} parent=1 // pred_fallthru
      _
    // Predicated region
    $region30: #{information_detection.1} parent=1 // pred_check
      _
    $region31: #{information_detection.1} parent=1 // pred_check_branch
      %81 = sbr.rel (0) target = $region33
    $region32: #{information_detection.1} parent=1 // pred_region
      %82 = dma.done [#allocation6], 256
    $region33: #{information_detection.1} parent=1 // pred_fallthru
      _
    // Predicated region
    $region34: #{information_detection.1} parent=1 // pred_check
      _
    $region35: #{information_detection.1} parent=1 // pred_check_branch
      %84 = sbr.rel (0) target = $region37
    $region36: #{information_detection.1} parent=1 // pred_region
      %85 = dma.done [#allocation6], 256
    $region37: #{information_detection.1} parent=1 // pred_fallthru
      _
    // Predicated region
    $region38: #{information_detection.1} parent=1 // pred_check
      _
    $region39: #{information_detection.1} parent=1 // pred_check_branch
      %87 = sbr.rel (0) target = $region41
    $region40: #{information_detection.1} parent=1 // pred_region
      %88 = dma.done [#allocation9], 13824
    $region41: #{information_detection.1} parent=1 // pred_fallthru
      _
    // Predicated region
    $region42: #{information_detection.1} parent=1 // pred_check
      _
    $region43: #{information_detection.1} parent=1 // pred_check_branch
      %90 = sbr.rel (0) target = $region45
    $region44: #{information_detection.1} parent=1 // pred_region
      %91 = dma.done [#allocation9], 384
    $region45: #{information_detection.1} parent=1 // pred_fallthru
      _
    %v93 = vld [vmem:[%s0] sm:$0x3]
    %v94 = vld [vmem:[#allocation2] sm:$0xff]
    %v95 = vld [vmem:[#allocation2 + $0x8] sm:$0xff]
    %v96 = vld [vmem:[#allocation5] sm:$0xff]
    %v97 = vld [vmem:[#allocation5 + $0x8] sm:$0xff]
    %v98 = vld [vmem:[#allocation7] sm:$0xff]
    %v99 = vld [vmem:[#allocation7 + $0x8] sm:$0xff]
    %v100 = vpack.c.bf16 %v99, %v98
    %v101 = vld [vmem:[#allocation8] sm:$0xf]
    %v102 = vld [vmem:[#allocation8 + $0x4] sm:$0xf]
    %v103 = vld [vmem:[#allocation8 + $0x8] sm:$0xf]
    %v104 = vld [vmem:[#allocation8 + $0xc] sm:$0xf]
    %v105 = vld [vmem:[#allocation8 + $0x10] sm:$0xf]
    %v106 = vld [vmem:[#allocation8 + $0x14] sm:$0xf]
    %v107 = vld [vmem:[#allocation8 + $0x18] sm:$0xf]
    %v108 = vld [vmem:[#allocation8 + $0x1c] sm:$0xf]
    %v109 = vld [vmem:[#allocation10] sm:$0x1]
    %v110 = vlaneseq
    %v111 = vshrl.u32 %v110, 7
    %v112 = vsub.s32 0, %v111
    %v113 = vrot.slane %v109, %v112
    %v122 = vunpack.c.l.b16 %v101
    %v123 = vunpack.c.l.b16 %v102
    %v124 = vunpack.c.l.b16 %v103
    %v125 = vunpack.c.l.b16 %v104
    %v126 = vunpack.c.l.b16 %v105
    %v127 = vunpack.c.l.b16 %v106
    %v128 = vunpack.c.l.b16 %v107
    %v129 = vunpack.c.l.b16 %v108
    %v130 = vpack.c.b16 %v123, %v122
    %v131 = vpack.c.b16 %v125, %v124
    %v132 = vpack.c.b16 %v127, %v126
    %v133 = vpack.c.b16 %v129, %v128
    %vm138 = vcmask 523264
    %v140 = vsel %vm138, %v100, 0
    %142 = vmatprep.subr.bf16.mxu0 0
    %143 = vmatpush1.bf16.msra.mxu0 0
    %144 = vmatprep.subr.bf16.mxu0 0
    %145 = vmatpush1.bf16.msra.mxu0 0
    %146 = vmatprep.subr.bf16.mxu0 0
    %147 = vmatpush1.bf16.msra.mxu0 0
    %148 = vmatprep.subr.bf16.mxu0 0
    %149 = vmatpush1.bf16.msra.mxu0 0
    %150 = vmatprep.subr.bf16.mxu0 0
    %151 = vmatpush1.bf16.msra.mxu0 %v133
    %152 = vmatprep.subr.bf16.mxu0 0
    %153 = vmatpush1.bf16.msra.mxu0 %v132
    %154 = vmatprep.subr.bf16.mxu0 0
    %155 = vmatpush1.bf16.msra.mxu0 %v131
    %156 = vmatprep.subr.bf16.mxu0 0
    %157 = vmatpush1.bf16.msra.mxu0 %v130
    %158 = vmatprep.subr.bf16.mxu0 0
    %159 = vmatpush2.bf16.msra.mxu0 0
    %160 = vmatprep.subr.bf16.mxu0 0
    %161 = vmatpush2.bf16.msra.mxu0 0
    %162 = vmatprep.subr.bf16.mxu0 0
    %163 = vmatpush2.bf16.msra.mxu0 0
    %164 = vmatprep.subr.bf16.mxu0 0
    %165 = vmatpush2.bf16.msra.mxu0 0
    %166 = vmatprep.subr.bf16.mxu0 0
    %167 = vmatpush2.bf16.msra.mxu0 0
    %168 = vmatprep.subr.bf16.mxu0 0
    %169 = vmatpush2.bf16.msra.mxu0 0
    %170 = vmatprep.subr.bf16.mxu0 0
    %171 = vmatpush2.bf16.msra.mxu0 0
    %172 = vmatprep.subr.bf16.mxu0 0
    %173 = vmatpush2.bf16.msra.mxu0 0
    %174 = vmatprep.mubr.bf16.mxu0 0
    %175 = vmatmul.mubr.bf16.gmra.mxu0 %v140
    %v176 = vpop.f32.mrf.mxu0
    %v177 = vadd.f32 %v113, %v176
    %v178 = vpop.f32.mrf.mxu0
    %v179 = vpop.f32.mrf.mxu0
    %v180 = vadd.f32 %v113, %v179
    %v181 = vpop.f32.mrf.mxu0
    %182 = vdwg.mxu0
    %v183 = vsub.f32 0.0, %v177
    %v184 = vsub.f32 0.0, %v180
    %v185 = vmul.f32 %v183, 1.442695
    %v186 = vpow.pop %v185
    %v187 = vmul.f32 %v184, 1.442695
    %v188 = vpow.pop %v187
    %v189 = vadd.f32 %v186, 1.0
    %v190 = vadd.f32 %v188, 1.0
    %v191 = vrcp.pop %v189
    %v192 = vrcp.pop %v190
    %v193 = vsel %vm138, %v94, -inf
    %194 = vmax.xlane.f32.xlu0 %v193
    %v195 = vpop.xlane.xlu0 %194
    %v196 = vsel %vm138, %v95, -inf
    %197 = vmax.xlane.f32.xlu0 %v196
    %v198 = vpop.xlane.xlu0 %197
    %v199 = vsub.f32 %v94, %v195
    %v200 = vsub.f32 %v95, %v198
    %v201 = vmul.f32 %v199, 1.442695
    %v202 = vpow.pop %v201
    %v203 = vmul.f32 %v200, 1.442695
    %v204 = vpow.pop %v203
    %v205 = vsel %vm138, %v202, 0.0
    %206 = vadd.xlane.f32.xlu0 %v205
    %v207 = vpop.xlane.xlu0 %206
    %v208 = vsel %vm138, %v204, 0.0
    %209 = vadd.xlane.f32.xlu0 %v208
    %v210 = vpop.xlane.xlu0 %209
    %v211 = vrcp.pop %v207
    %v212 = vrcp.pop %v210
    %v213 = vmul.f32 %v202, %v211
    %v214 = vmul.f32 %v204, %v212
    %v215 = vsel %vm138, %v96, -inf
    %216 = vmax.xlane.f32.xlu0 %v215
    %v217 = vpop.xlane.xlu0 %216
    %v218 = vsel %vm138, %v97, -inf
    %219 = vmax.xlane.f32.xlu0 %v218
    %v220 = vpop.xlane.xlu0 %219
    %v221 = vsub.f32 %v96, %v217
    %v222 = vsub.f32 %v97, %v220
    %v223 = vmul.f32 %v221, 1.442695
    %v224 = vpow.pop %v223
    %v225 = vmul.f32 %v222, 1.442695
    %v226 = vpow.pop %v225
    %v227 = vsel %vm138, %v224, 0.0
    %228 = vadd.xlane.f32.xlu0 %v227
    %v229 = vpop.xlane.xlu0 %228
    %v230 = vsel %vm138, %v226, 0.0
    %231 = vadd.xlane.f32.xlu0 %v230
    %v232 = vpop.xlane.xlu0 %231
    %v233 = vrcp.pop %v229
    %v234 = vrcp.pop %v232
    %v235 = vmul.f32 %v224, %v233
    %v236 = vmul.f32 %v226, %v234
    %v237 = vadd.f32 %v213, 1e-08
    %v238 = vadd.f32 %v214, 1e-08
    %v239 = vlog2.pop %v237
    %v240 = vmul.f32 %v239, 0.6931472
    %v241 = vlog2.pop %v238
    %v242 = vmul.f32 %v241, 0.6931472
    %v243 = vadd.f32 %v235, 1e-08
    %v244 = vadd.f32 %v236, 1e-08
    %v245 = vlog2.pop %v243
    %v246 = vmul.f32 %v245, 0.6931472
    %v247 = vlog2.pop %v244
    %v248 = vmul.f32 %v247, 0.6931472
    %v249 = vsub.f32 %v246, %v240
    %v250 = vsub.f32 %v248, %v242
    %v251 = vmul.f32 %v235, %v249
    %v252 = vmul.f32 %v236, %v250
    %v253 = vsel %vm138, %v251, 0.0
    %254 = vadd.xlane.f32.xlu0 %v253
    %v255 = vpop.xlane.xlu0 %254
    %v256 = vsel %vm138, %v252, 0.0
    %257 = vadd.xlane.f32.xlu0 %v256
    %v258 = vpop.xlane.xlu0 %257
    %v261 = vlaneseq
    %v262 = vand.u32 %v261, 127
    %v263 = vlaneseq
    %v264 = vshrl.u32 %v263, 7
    %v265 = vsub.s32 %v262, %v264
    %v266 = vrot.slane %v255, %v265
    %v267 = vlaneseq
    %v268 = vshrl.u32 %v267, 7
    %v269 = vsub.s32 %v262, %v268
    %v270 = vrot.slane %v258, %v269
    %vm271 = vcmask 1041409
    %v272 = vsel %vm271, %v270, %v266
    %vm274 = vcmask 58368
    %v275 = vsel %vm274, %v272, -inf
    %276 = vmax.xlane.f32.xlu0 %v275
    %v277 = vpop.xlane.xlu0 %276
    %v279 = vlaneseq
    %v280 = vshrl.u32 %v279, 7
    %v281 = vsub.s32 0, %v280
    %v282 = vrot.slane %v277, %v281
    %v283 = vlaneseq
    %v284 = vshrl.u32 %v283, 7
    %v285 = vsub.s32 1, %v284
    %v286 = vrot.slane %v277, %v285
    %v289 = vsub.f32 %v255, %v282
    %v290 = vsub.f32 %v258, %v286
    %v291 = vmul.f32 %v289, 1.442695
    %v292 = vpow.pop %v291
    %v293 = vmul.f32 %v290, 1.442695
    %v294 = vpow.pop %v293
    %297 = vset.pattern.permute.xlu0 0
    %298 = vperm.xlu0 %297, %v292
    %v299 = vpop.permute.xlu0 %298
    %300 = vset.pattern.permute.xlu0 0
    %301 = vperm.xlu0 %300, %v294
    %v302 = vpop.permute.xlu0 %301
    %v303 = vlaneseq
    %v304 = vshrl.u32 %v303, 7
    %v305 = vsub.s32 %v262, %v304
    %v306 = vrot.slane %v299, %v305
    %v307 = vlaneseq
    %v308 = vshrl.u32 %v307, 7
    %v309 = vsub.s32 %v262, %v308
    %v310 = vrot.slane %v302, %v309
    %v311 = vsel %vm271, %v310, %v306
    %v313 = vsel %vm274, %v311, 0.0
    %314 = vadd.xlane.f32.xlu0 %v313
    %v315 = vpop.xlane.xlu0 %314
    %v316 = vrcp.pop %v315
    %v318 = vlaneseq
    %v319 = vshrl.u32 %v318, 7
    %v320 = vsub.s32 0, %v319
    %v321 = vrot.slane %v316, %v320
    %v322 = vlaneseq
    %v323 = vshrl.u32 %v322, 7
    %v324 = vsub.s32 1, %v323
    %v325 = vrot.slane %v316, %v324
    %v328 = vmul.f32 %v292, %v321
    %v329 = vmul.f32 %v294, %v325
    %v330 = vpack.c.bf16 %v97, %v96
    %v331 = vld [vmem:[#allocation8 + $0xe0] sm:$0xf]
    %v332 = vld [vmem:[#allocation8 + $0xe4] sm:$0xf]
    %v333 = vld [vmem:[#allocation8 + $0xe8] sm:$0xf]
    %v334 = vld [vmem:[#allocation8 + $0xec] sm:$0xf]
    %v335 = vld [vmem:[#allocation8 + $0xf0] sm:$0xf]
    %v336 = vld [vmem:[#allocation8 + $0xf4] sm:$0xf]
    %v337 = vld [vmem:[#allocation8 + $0xf8] sm:$0xf]
    %v338 = vld [vmem:[#allocation8 + $0xfc] sm:$0xf]
    %v339 = vld [vmem:[#allocation10 + $0x8] sm:$0x1]
    %v340 = vlaneseq
    %v341 = vshrl.u32 %v340, 7
    %v342 = vsub.s32 0, %v341
    %v343 = vrot.slane %v339, %v342
    %v352 = vunpack.c.l.b16 %v331
    %v353 = vunpack.c.l.b16 %v332
    %v354 = vunpack.c.l.b16 %v333
    %v355 = vunpack.c.l.b16 %v334
    %v356 = vunpack.c.l.b16 %v335
    %v357 = vunpack.c.l.b16 %v336
    %v358 = vunpack.c.l.b16 %v337
    %v359 = vunpack.c.l.b16 %v338
    %v360 = vpack.c.b16 %v353, %v352
    %v361 = vpack.c.b16 %v355, %v354
    %v362 = vpack.c.b16 %v357, %v356
    %v363 = vpack.c.b16 %v359, %v358
    %v369 = vsel %vm138, %v330, 0
    %371 = vmatprep.subr.bf16.mxu0 0
    %372 = vmatpush1.bf16.msra.mxu0 0
    %373 = vmatprep.subr.bf16.mxu0 0
    %374 = vmatpush1.bf16.msra.mxu0 0
    %375 = vmatprep.subr.bf16.mxu0 0
    %376 = vmatpush1.bf16.msra.mxu0 0
    %377 = vmatprep.subr.bf16.mxu0 0
    %378 = vmatpush1.bf16.msra.mxu0 0
    %379 = vmatprep.subr.bf16.mxu0 0
    %380 = vmatpush1.bf16.msra.mxu0 %v363
    %381 = vmatprep.subr.bf16.mxu0 0
    %382 = vmatpush1.bf16.msra.mxu0 %v362
    %383 = vmatprep.subr.bf16.mxu0 0
    %384 = vmatpush1.bf16.msra.mxu0 %v361
    %385 = vmatprep.subr.bf16.mxu0 0
    %386 = vmatpush1.bf16.msra.mxu0 %v360
    %387 = vmatprep.subr.bf16.mxu0 0
    %388 = vmatpush2.bf16.msra.mxu0 0
    %389 = vmatprep.subr.bf16.mxu0 0
    %390 = vmatpush2.bf16.msra.mxu0 0
    %391 = vmatprep.subr.bf16.mxu0 0
    %392 = vmatpush2.bf16.msra.mxu0 0
    %393 = vmatprep.subr.bf16.mxu0 0
    %394 = vmatpush2.bf16.msra.mxu0 0
    %395 = vmatprep.subr.bf16.mxu0 0
    %396 = vmatpush2.bf16.msra.mxu0 0
    %397 = vmatprep.subr.bf16.mxu0 0
    %398 = vmatpush2.bf16.msra.mxu0 0
    %399 = vmatprep.subr.bf16.mxu0 0
    %400 = vmatpush2.bf16.msra.mxu0 0
    %401 = vmatprep.subr.bf16.mxu0 0
    %402 = vmatpush2.bf16.msra.mxu0 0
    %403 = vmatprep.mubr.bf16.mxu0 0
    %404 = vmatmul.mubr.bf16.gmra.mxu0 %v369
    %v405 = vpop.f32.mrf.mxu0
    %v406 = vadd.f32 %v343, %v405
    %v407 = vpop.f32.mrf.mxu0
    %v408 = vpop.f32.mrf.mxu0
    %v409 = vadd.f32 %v343, %v408
    %v410 = vpop.f32.mrf.mxu0
    %411 = vdwg.mxu0
    %v412 = vpack.c.bf16 %v95, %v94
    %v413 = vld [vmem:[#allocation8 + $0x100] sm:$0xf]
    %v414 = vld [vmem:[#allocation8 + $0x104] sm:$0xf]
    %v415 = vld [vmem:[#allocation8 + $0x108] sm:$0xf]
    %v416 = vld [vmem:[#allocation8 + $0x10c] sm:$0xf]
    %v417 = vld [vmem:[#allocation8 + $0x110] sm:$0xf]
    %v418 = vld [vmem:[#allocation8 + $0x114] sm:$0xf]
    %v419 = vld [vmem:[#allocation8 + $0x118] sm:$0xf]
    %v420 = vld [vmem:[#allocation8 + $0x11c] sm:$0xf]
    %v421 = vld [vmem:[#allocation10 + $0x9] sm:$0x1]
    %v422 = vlaneseq
    %v423 = vshrl.u32 %v422, 7
    %v424 = vsub.s32 0, %v423
    %v425 = vrot.slane %v421, %v424
    %v434 = vunpack.c.l.b16 %v413
    %v435 = vunpack.c.l.b16 %v414
    %v436 = vunpack.c.l.b16 %v415
    %v437 = vunpack.c.l.b16 %v416
    %v438 = vunpack.c.l.b16 %v417
    %v439 = vunpack.c.l.b16 %v418
    %v440 = vunpack.c.l.b16 %v419
    %v441 = vunpack.c.l.b16 %v420
    %v442 = vpack.c.b16 %v435, %v434
    %v443 = vpack.c.b16 %v437, %v436
    %v444 = vpack.c.b16 %v439, %v438
    %v445 = vpack.c.b16 %v441, %v440
    %v451 = vsel %vm138, %v412, 0
    %453 = vmatprep.subr.bf16.mxu0 0
    %454 = vmatpush1.bf16.msra.mxu0 0
    %455 = vmatprep.subr.bf16.mxu0 0
    %456 = vmatpush1.bf16.msra.mxu0 0
    %457 = vmatprep.subr.bf16.mxu0 0
    %458 = vmatpush1.bf16.msra.mxu0 0
    %459 = vmatprep.subr.bf16.mxu0 0
    %460 = vmatpush1.bf16.msra.mxu0 0
    %461 = vmatprep.subr.bf16.mxu0 0
    %462 = vmatpush1.bf16.msra.mxu0 %v445
    %463 = vmatprep.subr.bf16.mxu0 0
    %464 = vmatpush1.bf16.msra.mxu0 %v444
    %465 = vmatprep.subr.bf16.mxu0 0
    %466 = vmatpush1.bf16.msra.mxu0 %v443
    %467 = vmatprep.subr.bf16.mxu0 0
    %468 = vmatpush1.bf16.msra.mxu0 %v442
    %469 = vmatprep.subr.bf16.mxu0 0
    %470 = vmatpush2.bf16.msra.mxu0 0
    %471 = vmatprep.subr.bf16.mxu0 0
    %472 = vmatpush2.bf16.msra.mxu0 0
    %473 = vmatprep.subr.bf16.mxu0 0
    %474 = vmatpush2.bf16.msra.mxu0 0
    %475 = vmatprep.subr.bf16.mxu0 0
    %476 = vmatpush2.bf16.msra.mxu0 0
    %477 = vmatprep.subr.bf16.mxu0 0
    %478 = vmatpush2.bf16.msra.mxu0 0
    %479 = vmatprep.subr.bf16.mxu0 0
    %480 = vmatpush2.bf16.msra.mxu0 0
    %481 = vmatprep.subr.bf16.mxu0 0
    %482 = vmatpush2.bf16.msra.mxu0 0
    %483 = vmatprep.subr.bf16.mxu0 0
    %484 = vmatpush2.bf16.msra.mxu0 0
    %485 = vmatprep.mubr.bf16.mxu0 0
    %486 = vmatmul.mubr.bf16.gmra.mxu0 %v451
    %v487 = vpop.f32.mrf.mxu0
    %v488 = vadd.f32 %v425, %v487
    %v489 = vpop.f32.mrf.mxu0
    %v490 = vpop.f32.mrf.mxu0
    %v491 = vadd.f32 %v425, %v490
    %v492 = vpop.f32.mrf.mxu0
    %493 = vdwg.mxu0
    %v494 = vpack.c.bf16 %v406, %v406
    %v495 = vpack.c.bf16 %v409, %v409
    %v496 = vpack.c.bf16 %v488, %v488
    %v497 = vpack.c.bf16 %v491, %v491
    %498 = vmatprep.subr.bf16.mxu0 0
    %499 = vmatpush1.bf16.xpose.msra.mxu0 0
    %500 = vmatprep.subr.bf16.mxu0 0
    %501 = vmatpush1.bf16.xpose.msra.mxu0 0
    %502 = vmatprep.subr.bf16.mxu0 0
    %503 = vmatpush1.bf16.xpose.msra.mxu0 0
    %504 = vmatprep.subr.bf16.mxu0 0
    %505 = vmatpush1.bf16.xpose.msra.mxu0 0
    %506 = vmatprep.subr.bf16.mxu0 0
    %507 = vmatpush1.bf16.xpose.msra.mxu0 0
    %508 = vmatprep.subr.bf16.mxu0 0
    %509 = vmatpush1.bf16.xpose.msra.mxu0 0
    %510 = vmatprep.subr.bf16.mxu0 0
    %511 = vmatpush1.bf16.xpose.msra.mxu0 0
    %512 = vmatprep.subr.bf16.mxu0 0
    %513 = vmatpush1.bf16.xpose.msra.mxu0 %v496
    %514 = vmatprep.subr.bf16.mxu0 0
    %515 = vmatpush2.bf16.xpose.msra.mxu0 0
    %516 = vmatprep.subr.bf16.mxu0 0
    %517 = vmatpush2.bf16.xpose.msra.mxu0 0
    %518 = vmatprep.subr.bf16.mxu0 0
    %519 = vmatpush2.bf16.xpose.msra.mxu0 0
    %520 = vmatprep.subr.bf16.mxu0 0
    %521 = vmatpush2.bf16.xpose.msra.mxu0 0
    %522 = vmatprep.subr.bf16.mxu0 0
    %523 = vmatpush2.bf16.xpose.msra.mxu0 0
    %524 = vmatprep.subr.bf16.mxu0 0
    %525 = vmatpush2.bf16.xpose.msra.mxu0 0
    %526 = vmatprep.subr.bf16.mxu0 0
    %527 = vmatpush2.bf16.xpose.msra.mxu0 0
    %528 = vmatprep.subr.bf16.mxu0 0
    %529 = vmatpush2.bf16.xpose.msra.mxu0 0
    %530 = vmatprep.mubr.bf16.mxu0 0
    %531 = vmatmul.mubr.bf16.gmra.mxu0 %v494
    %v532 = vpop.f32.mrf.mxu0
    %v533 = vadd.f32 0.0, %v532
    %v534 = vpop.f32.mrf.mxu0
    %v535 = vpop.f32.mrf.mxu0
    %v536 = vpop.f32.mrf.mxu0
    %537 = vdwg.mxu0
    %538 = vmatprep.subr.bf16.mxu0 0
    %539 = vmatpush1.bf16.xpose.msra.mxu0 0
    %540 = vmatprep.subr.bf16.mxu0 0
    %541 = vmatpush1.bf16.xpose.msra.mxu0 0
    %542 = vmatprep.subr.bf16.mxu0 0
    %543 = vmatpush1.bf16.xpose.msra.mxu0 0
    %544 = vmatprep.subr.bf16.mxu0 0
    %545 = vmatpush1.bf16.xpose.msra.mxu0 0
    %546 = vmatprep.subr.bf16.mxu0 0
    %547 = vmatpush1.bf16.xpose.msra.mxu0 0
    %548 = vmatprep.subr.bf16.mxu0 0
    %549 = vmatpush1.bf16.xpose.msra.mxu0 0
    %550 = vmatprep.subr.bf16.mxu0 0
    %551 = vmatpush1.bf16.xpose.msra.mxu0 0
    %552 = vmatprep.subr.bf16.mxu0 0
    %553 = vmatpush1.bf16.xpose.msra.mxu0 %v497
    %554 = vmatprep.subr.bf16.mxu0 0
    %555 = vmatpush2.bf16.xpose.msra.mxu0 0
    %556 = vmatprep.subr.bf16.mxu0 0
    %557 = vmatpush2.bf16.xpose.msra.mxu0 0
    %558 = vmatprep.subr.bf16.mxu0 0
    %559 = vmatpush2.bf16.xpose.msra.mxu0 0
    %560 = vmatprep.subr.bf16.mxu0 0
    %561 = vmatpush2.bf16.xpose.msra.mxu0 0
    %562 = vmatprep.subr.bf16.mxu0 0
    %563 = vmatpush2.bf16.xpose.msra.mxu0 0
    %564 = vmatprep.subr.bf16.mxu0 0
    %565 = vmatpush2.bf16.xpose.msra.mxu0 0
    %566 = vmatprep.subr.bf16.mxu0 0
    %567 = vmatpush2.bf16.xpose.msra.mxu0 0
    %568 = vmatprep.subr.bf16.mxu0 0
    %569 = vmatpush2.bf16.xpose.msra.mxu0 0
    %570 = vmatprep.mubr.bf16.mxu0 0
    %571 = vmatmul.mubr.bf16.gmra.mxu0 %v495
    %v572 = vpop.f32.mrf.mxu0
    %v573 = vadd.f32 0.0, %v572
    %v574 = vpop.f32.mrf.mxu0
    %v575 = vpop.f32.mrf.mxu0
    %v576 = vpop.f32.mrf.mxu0
    %577 = vdwg.mxu0
    %vm578 = vcmask 64512
    %v579 = vsel %vm578, %v533, -inf
    %580 = vmax.xlane.f32.xlu0 %v579
    %v581 = vpop.xlane.xlu0 %580
    %v582 = vsel %vm578, %v573, -inf
    %583 = vmax.xlane.f32.xlu0 %v582
    %v584 = vpop.xlane.xlu0 %583
    %v585 = vsub.f32 %v533, %v581
    %v586 = vsub.f32 %v573, %v584
    %v587 = vmul.f32 %v585, 1.442695
    %v588 = vpow.pop %v587
    %v589 = vmul.f32 %v586, 1.442695
    %v590 = vpow.pop %v589
    %v591 = vsel %vm578, %v588, 0.0
    %592 = vadd.xlane.f32.xlu0 %v591
    %v593 = vpop.xlane.xlu0 %592
    %v594 = vsel %vm578, %v590, 0.0
    %595 = vadd.xlane.f32.xlu0 %v594
    %v596 = vpop.xlane.xlu0 %595
    %v597 = vrcp.pop %v593
    %v598 = vrcp.pop %v596
    %v599 = vmul.f32 %v588, %v597
    %v600 = vmul.f32 %v590, %v598
    %v601 = vpack.c.bf16 %v599, %v599
    %v602 = vpack.c.bf16 %v600, %v600
    %v604 = vsel %vm578, %v601, 0
    %vm606 = vcmask 1043456
    %v608 = vsel %vm606, %v496, 0
    %610 = vmatprep.subr.bf16.mxu0 0
    %611 = vmatpush1.bf16.msra.mxu0 0
    %612 = vmatprep.subr.bf16.mxu0 0
    %613 = vmatpush1.bf16.msra.mxu0 0
    %614 = vmatprep.subr.bf16.mxu0 0
    %615 = vmatpush1.bf16.msra.mxu0 0
    %616 = vmatprep.subr.bf16.mxu0 0
    %617 = vmatpush1.bf16.msra.mxu0 0
    %618 = vmatprep.subr.bf16.mxu0 0
    %619 = vmatpush1.bf16.msra.mxu0 0
    %620 = vmatprep.subr.bf16.mxu0 0
    %621 = vmatpush1.bf16.msra.mxu0 0
    %622 = vmatprep.subr.bf16.mxu0 0
    %623 = vmatpush1.bf16.msra.mxu0 0
    %624 = vmatprep.subr.bf16.mxu0 0
    %625 = vmatpush1.bf16.msra.mxu0 %v608
    %626 = vmatprep.subr.bf16.mxu0 0
    %627 = vmatpush2.bf16.msra.mxu0 0
    %628 = vmatprep.subr.bf16.mxu0 0
    %629 = vmatpush2.bf16.msra.mxu0 0
    %630 = vmatprep.subr.bf16.mxu0 0
    %631 = vmatpush2.bf16.msra.mxu0 0
    %632 = vmatprep.subr.bf16.mxu0 0
    %633 = vmatpush2.bf16.msra.mxu0 0
    %634 = vmatprep.subr.bf16.mxu0 0
    %635 = vmatpush2.bf16.msra.mxu0 0
    %636 = vmatprep.subr.bf16.mxu0 0
    %637 = vmatpush2.bf16.msra.mxu0 0
    %638 = vmatprep.subr.bf16.mxu0 0
    %639 = vmatpush2.bf16.msra.mxu0 0
    %640 = vmatprep.subr.bf16.mxu0 0
    %641 = vmatpush2.bf16.msra.mxu0 0
    %642 = vmatprep.mubr.bf16.mxu0 0
    %643 = vmatmul.mubr.bf16.gmra.mxu0 %v604
    %v644 = vpop.f32.mrf.mxu0
    %v645 = vadd.f32 0.0, %v644
    %v646 = vpop.f32.mrf.mxu0
    %v647 = vpop.f32.mrf.mxu0
    %v648 = vpop.f32.mrf.mxu0
    %649 = vdwg.mxu0
    %v651 = vsel %vm578, %v602, 0
    %v654 = vsel %vm606, %v497, 0
    %656 = vmatprep.subr.bf16.mxu0 0
    %657 = vmatpush1.bf16.msra.mxu0 0
    %658 = vmatprep.subr.bf16.mxu0 0
    %659 = vmatpush1.bf16.msra.mxu0 0
    %660 = vmatprep.subr.bf16.mxu0 0
    %661 = vmatpush1.bf16.msra.mxu0 0
    %662 = vmatprep.subr.bf16.mxu0 0
    %663 = vmatpush1.bf16.msra.mxu0 0
    %664 = vmatprep.subr.bf16.mxu0 0
    %665 = vmatpush1.bf16.msra.mxu0 0
    %666 = vmatprep.subr.bf16.mxu0 0
    %667 = vmatpush1.bf16.msra.mxu0 0
    %668 = vmatprep.subr.bf16.mxu0 0
    %669 = vmatpush1.bf16.msra.mxu0 0
    %670 = vmatprep.subr.bf16.mxu0 0
    %671 = vmatpush1.bf16.msra.mxu0 %v654
    %672 = vmatprep.subr.bf16.mxu0 0
    %673 = vmatpush2.bf16.msra.mxu0 0
    %674 = vmatprep.subr.bf16.mxu0 0
    %675 = vmatpush2.bf16.msra.mxu0 0
    %676 = vmatprep.subr.bf16.mxu0 0
    %677 = vmatpush2.bf16.msra.mxu0 0
    %678 = vmatprep.subr.bf16.mxu0 0
    %679 = vmatpush2.bf16.msra.mxu0 0
    %680 = vmatprep.subr.bf16.mxu0 0
    %681 = vmatpush2.bf16.msra.mxu0 0
    %682 = vmatprep.subr.bf16.mxu0 0
    %683 = vmatpush2.bf16.msra.mxu0 0
    %684 = vmatprep.subr.bf16.mxu0 0
    %685 = vmatpush2.bf16.msra.mxu0 0
    %686 = vmatprep.subr.bf16.mxu0 0
    %687 = vmatpush2.bf16.msra.mxu0 0
    %688 = vmatprep.mubr.bf16.mxu0 0
    %689 = vmatmul.mubr.bf16.gmra.mxu0 %v651
    %v690 = vpop.f32.mrf.mxu0
    %v691 = vadd.f32 0.0, %v690
    %v692 = vpop.f32.mrf.mxu0
    %v693 = vpop.f32.mrf.mxu0
    %v694 = vpop.f32.mrf.mxu0
    %695 = vdwg.mxu0
    %v696 = vpack.c.bf16 %v691, %v645
    %v697 = vld [vmem:[#allocation8 + $0x120] sm:$0xf]
    %v698 = vld [vmem:[#allocation8 + $0x124] sm:$0xf]
    %v699 = vld [vmem:[#allocation8 + $0x128] sm:$0xf]
    %v700 = vld [vmem:[#allocation8 + $0x12c] sm:$0xf]
    %v701 = vld [vmem:[#allocation8 + $0x130] sm:$0xf]
    %v702 = vld [vmem:[#allocation8 + $0x134] sm:$0xf]
    %v703 = vld [vmem:[#allocation8 + $0x138] sm:$0xf]
    %v704 = vld [vmem:[#allocation8 + $0x13c] sm:$0xf]
    %v705 = vld [vmem:[#allocation8 + $0x140] sm:$0xf]
    %v706 = vld [vmem:[#allocation8 + $0x144] sm:$0xf]
    %v707 = vld [vmem:[#allocation8 + $0x148] sm:$0xf]
    %v708 = vld [vmem:[#allocation8 + $0x14c] sm:$0xf]
    %v709 = vld [vmem:[#allocation8 + $0x150] sm:$0xf]
    %v710 = vld [vmem:[#allocation8 + $0x154] sm:$0xf]
    %v711 = vld [vmem:[#allocation8 + $0x158] sm:$0xf]
    %v712 = vld [vmem:[#allocation8 + $0x15c] sm:$0xf]
    %v713 = vld [vmem:[#allocation10 + $0xa] sm:$0x1]
    %v714 = vlaneseq
    %v715 = vshrl.u32 %v714, 7
    %v716 = vsub.s32 0, %v715
    %v717 = vrot.slane %v713, %v716
    %v734 = vunpack.c.l.b16 %v697
    %v735 = vunpack.c.l.b16 %v698
    %v736 = vunpack.c.l.b16 %v699
    %v737 = vunpack.c.l.b16 %v700
    %v738 = vunpack.c.l.b16 %v701
    %v739 = vunpack.c.l.b16 %v702
    %v740 = vunpack.c.l.b16 %v703
    %v741 = vunpack.c.l.b16 %v704
    %v742 = vunpack.c.l.b16 %v705
    %v743 = vunpack.c.l.b16 %v706
    %v744 = vunpack.c.l.b16 %v707
    %v745 = vunpack.c.l.b16 %v708
    %v746 = vunpack.c.l.b16 %v709
    %v747 = vunpack.c.l.b16 %v710
    %v748 = vunpack.c.l.b16 %v711
    %v749 = vunpack.c.l.b16 %v712
    %v750 = vpack.c.b16 %v735, %v734
    %v751 = vpack.c.b16 %v737, %v736
    %v752 = vpack.c.b16 %v739, %v738
    %v753 = vpack.c.b16 %v741, %v740
    %v754 = vpack.c.b16 %v743, %v742
    %v755 = vpack.c.b16 %v745, %v744
    %v756 = vpack.c.b16 %v747, %v746
    %v757 = vpack.c.b16 %v749, %v748
    %766 = vmatprep.subr.bf16.mxu0 0
    %767 = vmatpush1.bf16.msra.mxu0 %v757
    %768 = vmatprep.subr.bf16.mxu0 0
    %769 = vmatpush1.bf16.msra.mxu0 %v756
    %770 = vmatprep.subr.bf16.mxu0 0
    %771 = vmatpush1.bf16.msra.mxu0 %v755
    %772 = vmatprep.subr.bf16.mxu0 0
    %773 = vmatpush1.bf16.msra.mxu0 %v754
    %774 = vmatprep.subr.bf16.mxu0 0
    %775 = vmatpush1.bf16.msra.mxu0 %v753
    %776 = vmatprep.subr.bf16.mxu0 0
    %777 = vmatpush1.bf16.msra.mxu0 %v752
    %778 = vmatprep.subr.bf16.mxu0 0
    %779 = vmatpush1.bf16.msra.mxu0 %v751
    %780 = vmatprep.subr.bf16.mxu0 0
    %781 = vmatpush1.bf16.msra.mxu0 %v750
    %782 = vmatprep.subr.bf16.mxu0 0
    %783 = vmatpush2.bf16.msra.mxu0 0
    %784 = vmatprep.subr.bf16.mxu0 0
    %785 = vmatpush2.bf16.msra.mxu0 0
    %786 = vmatprep.subr.bf16.mxu0 0
    %787 = vmatpush2.bf16.msra.mxu0 0
    %788 = vmatprep.subr.bf16.mxu0 0
    %789 = vmatpush2.bf16.msra.mxu0 0
    %790 = vmatprep.subr.bf16.mxu0 0
    %791 = vmatpush2.bf16.msra.mxu0 0
    %792 = vmatprep.subr.bf16.mxu0 0
    %793 = vmatpush2.bf16.msra.mxu0 0
    %794 = vmatprep.subr.bf16.mxu0 0
    %795 = vmatpush2.bf16.msra.mxu0 0
    %796 = vmatprep.subr.bf16.mxu0 0
    %797 = vmatpush2.bf16.msra.mxu0 0
    %798 = vmatprep.mubr.bf16.mxu0 0
    %799 = vmatmul.mubr.bf16.gmra.mxu0 %v696
    %v800 = vpop.f32.mrf.mxu0
    %v801 = vadd.f32 %v717, %v800
    %v802 = vpop.f32.mrf.mxu0
    %v803 = vpop.f32.mrf.mxu0
    %v804 = vadd.f32 %v717, %v803
    %v805 = vpop.f32.mrf.mxu0
    %806 = vdwg.mxu0
    %808 = vset.pattern.permute.xlu0 0
    %809 = vperm.xlu0 %808, %v328
    %v810 = vpop.permute.xlu0 %809
    %813 = vset.pattern.permute.xlu0 0
    %814 = vperm.xlu0 %813, %v329
    %v815 = vpop.permute.xlu0 %814
    %v817 = vmul.f32 %v801, %v810
    %v818 = vmul.f32 %v804, %v815
    %v819 = vpack.c.bf16 %v818, %v817
    %v820 = vld [vmem:[#allocation8 + $0x160] sm:$0xf]
    %v821 = vld [vmem:[#allocation8 + $0x164] sm:$0xf]
    %v822 = vld [vmem:[#allocation8 + $0x168] sm:$0xf]
    %v823 = vld [vmem:[#allocation8 + $0x16c] sm:$0xf]
    %v824 = vld [vmem:[#allocation8 + $0x170] sm:$0xf]
    %v825 = vld [vmem:[#allocation8 + $0x174] sm:$0xf]
    %v826 = vld [vmem:[#allocation8 + $0x178] sm:$0xf]
    %v827 = vld [vmem:[#allocation8 + $0x17c] sm:$0xf]
    %v828 = vld [vmem:[#allocation8 + $0x180] sm:$0xf]
    %v829 = vld [vmem:[#allocation8 + $0x184] sm:$0xf]
    %v830 = vld [vmem:[#allocation8 + $0x188] sm:$0xf]
    %v831 = vld [vmem:[#allocation8 + $0x18c] sm:$0xf]
    %v832 = vld [vmem:[#allocation8 + $0x190] sm:$0xf]
    %v833 = vld [vmem:[#allocation8 + $0x194] sm:$0xf]
    %v834 = vld [vmem:[#allocation8 + $0x198] sm:$0xf]
    %v835 = vld [vmem:[#allocation8 + $0x19c] sm:$0xf]
    %v836 = vld [vmem:[#allocation10 + $0xb] sm:$0x1]
    %v837 = vlaneseq
    %v838 = vshrl.u32 %v837, 7
    %v839 = vsub.s32 0, %v838
    %v840 = vrot.slane %v836, %v839
    %v857 = vunpack.c.l.b16 %v820
    %v858 = vunpack.c.l.b16 %v821
    %v859 = vunpack.c.l.b16 %v822
    %v860 = vunpack.c.l.b16 %v823
    %v861 = vunpack.c.l.b16 %v824
    %v862 = vunpack.c.l.b16 %v825
    %v863 = vunpack.c.l.b16 %v826
    %v864 = vunpack.c.l.b16 %v827
    %v865 = vunpack.c.l.b16 %v828
    %v866 = vunpack.c.l.b16 %v829
    %v867 = vunpack.c.l.b16 %v830
    %v868 = vunpack.c.l.b16 %v831
    %v869 = vunpack.c.l.b16 %v832
    %v870 = vunpack.c.l.b16 %v833
    %v871 = vunpack.c.l.b16 %v834
    %v872 = vunpack.c.l.b16 %v835
    %v873 = vpack.c.b16 %v858, %v857
    %v874 = vpack.c.b16 %v860, %v859
    %v875 = vpack.c.b16 %v862, %v861
    %v876 = vpack.c.b16 %v864, %v863
    %v877 = vpack.c.b16 %v866, %v865
    %v878 = vpack.c.b16 %v868, %v867
    %v879 = vpack.c.b16 %v870, %v869
    %v880 = vpack.c.b16 %v872, %v871
    %889 = vmatprep.subr.bf16.mxu0 0
    %890 = vmatpush1.bf16.msra.mxu0 %v880
    %891 = vmatprep.subr.bf16.mxu0 0
    %892 = vmatpush1.bf16.msra.mxu0 %v879
    %893 = vmatprep.subr.bf16.mxu0 0
    %894 = vmatpush1.bf16.msra.mxu0 %v878
    %895 = vmatprep.subr.bf16.mxu0 0
    %896 = vmatpush1.bf16.msra.mxu0 %v877
    %897 = vmatprep.subr.bf16.mxu0 0
    %898 = vmatpush1.bf16.msra.mxu0 %v876
    %899 = vmatprep.subr.bf16.mxu0 0
    %900 = vmatpush1.bf16.msra.mxu0 %v875
    %901 = vmatprep.subr.bf16.mxu0 0
    %902 = vmatpush1.bf16.msra.mxu0 %v874
    %903 = vmatprep.subr.bf16.mxu0 0
    %904 = vmatpush1.bf16.msra.mxu0 %v873
    %905 = vmatprep.subr.bf16.mxu0 0
    %906 = vmatpush2.bf16.msra.mxu0 0
    %907 = vmatprep.subr.bf16.mxu0 0
    %908 = vmatpush2.bf16.msra.mxu0 0
    %909 = vmatprep.subr.bf16.mxu0 0
    %910 = vmatpush2.bf16.msra.mxu0 0
    %911 = vmatprep.subr.bf16.mxu0 0
    %912 = vmatpush2.bf16.msra.mxu0 0
    %913 = vmatprep.subr.bf16.mxu0 0
    %914 = vmatpush2.bf16.msra.mxu0 0
    %915 = vmatprep.subr.bf16.mxu0 0
    %916 = vmatpush2.bf16.msra.mxu0 0
    %917 = vmatprep.subr.bf16.mxu0 0
    %918 = vmatpush2.bf16.msra.mxu0 0
    %919 = vmatprep.subr.bf16.mxu0 0
    %920 = vmatpush2.bf16.msra.mxu0 0
    %921 = vmatprep.mubr.bf16.mxu0 0
    %922 = vmatmul.mubr.bf16.gmra.mxu0 %v819
    %v923 = vpop.f32.mrf.mxu0
    %v924 = vadd.f32 %v840, %v923
    %v925 = vpop.f32.mrf.mxu0
    %v926 = vpop.f32.mrf.mxu0
    %v927 = vadd.f32 %v840, %v926
    %v928 = vpop.f32.mrf.mxu0
    %929 = vdwg.mxu0
    %v930 = vpack.c.bf16 %v180, %v177
    %v931 = vld [vmem:[#allocation8 + $0x1a0] sm:$0xf]
    %v932 = vld [vmem:[#allocation8 + $0x1a4] sm:$0xf]
    %v933 = vld [vmem:[#allocation8 + $0x1a8] sm:$0xf]
    %v934 = vld [vmem:[#allocation8 + $0x1ac] sm:$0xf]
    %v935 = vld [vmem:[#allocation8 + $0x1b0] sm:$0xf]
    %v936 = vld [vmem:[#allocation8 + $0x1b4] sm:$0xf]
    %v937 = vld [vmem:[#allocation8 + $0x1b8] sm:$0xf]
    %v938 = vld [vmem:[#allocation8 + $0x1bc] sm:$0xf]
    %v939 = vld [vmem:[#allocation8 + $0x1c0] sm:$0xf]
    %v940 = vld [vmem:[#allocation8 + $0x1c4] sm:$0xf]
    %v941 = vld [vmem:[#allocation8 + $0x1c8] sm:$0xf]
    %v942 = vld [vmem:[#allocation8 + $0x1cc] sm:$0xf]
    %v943 = vld [vmem:[#allocation8 + $0x1d0] sm:$0xf]
    %v944 = vld [vmem:[#allocation8 + $0x1d4] sm:$0xf]
    %v945 = vld [vmem:[#allocation8 + $0x1d8] sm:$0xf]
    %v946 = vld [vmem:[#allocation8 + $0x1dc] sm:$0xf]
    %v947 = vld [vmem:[#allocation10 + $0xc] sm:$0x1]
    %v948 = vlaneseq
    %v949 = vshrl.u32 %v948, 7
    %v950 = vsub.s32 0, %v949
    %v951 = vrot.slane %v947, %v950
    %v968 = vunpack.c.l.b16 %v931
    %v969 = vunpack.c.l.b16 %v932
    %v970 = vunpack.c.l.b16 %v933
    %v971 = vunpack.c.l.b16 %v934
    %v972 = vunpack.c.l.b16 %v935
    %v973 = vunpack.c.l.b16 %v936
    %v974 = vunpack.c.l.b16 %v937
    %v975 = vunpack.c.l.b16 %v938
    %v976 = vunpack.c.l.b16 %v939
    %v977 = vunpack.c.l.b16 %v940
    %v978 = vunpack.c.l.b16 %v941
    %v979 = vunpack.c.l.b16 %v942
    %v980 = vunpack.c.l.b16 %v943
    %v981 = vunpack.c.l.b16 %v944
    %v982 = vunpack.c.l.b16 %v945
    %v983 = vunpack.c.l.b16 %v946
    %v984 = vpack.c.b16 %v969, %v968
    %v985 = vpack.c.b16 %v971, %v970
    %v986 = vpack.c.b16 %v973, %v972
    %v987 = vpack.c.b16 %v975, %v974
    %v988 = vpack.c.b16 %v977, %v976
    %v989 = vpack.c.b16 %v979, %v978
    %v990 = vpack.c.b16 %v981, %v980
    %v991 = vpack.c.b16 %v983, %v982
    %1000 = vmatprep.subr.bf16.mxu0 0
    %1001 = vmatpush1.bf16.msra.mxu0 %v991
    %1002 = vmatprep.subr.bf16.mxu0 0
    %1003 = vmatpush1.bf16.msra.mxu0 %v990
    %1004 = vmatprep.subr.bf16.mxu0 0
    %1005 = vmatpush1.bf16.msra.mxu0 %v989
    %1006 = vmatprep.subr.bf16.mxu0 0
    %1007 = vmatpush1.bf16.msra.mxu0 %v988
    %1008 = vmatprep.subr.bf16.mxu0 0
    %1009 = vmatpush1.bf16.msra.mxu0 %v987
    %1010 = vmatprep.subr.bf16.mxu0 0
    %1011 = vmatpush1.bf16.msra.mxu0 %v986
    %1012 = vmatprep.subr.bf16.mxu0 0
    %1013 = vmatpush1.bf16.msra.mxu0 %v985
    %1014 = vmatprep.subr.bf16.mxu0 0
    %1015 = vmatpush1.bf16.msra.mxu0 %v984
    %1016 = vmatprep.subr.bf16.mxu0 0
    %1017 = vmatpush2.bf16.msra.mxu0 0
    %1018 = vmatprep.subr.bf16.mxu0 0
    %1019 = vmatpush2.bf16.msra.mxu0 0
    %1020 = vmatprep.subr.bf16.mxu0 0
    %1021 = vmatpush2.bf16.msra.mxu0 0
    %1022 = vmatprep.subr.bf16.mxu0 0
    %1023 = vmatpush2.bf16.msra.mxu0 0
    %1024 = vmatprep.subr.bf16.mxu0 0
    %1025 = vmatpush2.bf16.msra.mxu0 0
    %1026 = vmatprep.subr.bf16.mxu0 0
    %1027 = vmatpush2.bf16.msra.mxu0 0
    %1028 = vmatprep.subr.bf16.mxu0 0
    %1029 = vmatpush2.bf16.msra.mxu0 0
    %1030 = vmatprep.subr.bf16.mxu0 0
    %1031 = vmatpush2.bf16.msra.mxu0 0
    %1032 = vmatprep.mubr.bf16.mxu0 0
    %1033 = vmatmul.mubr.bf16.gmra.mxu0 %v930
    %v1034 = vpop.f32.mrf.mxu0
    %v1035 = vadd.f32 %v951, %v1034
    %v1036 = vpop.f32.mrf.mxu0
    %v1037 = vpop.f32.mrf.mxu0
    %v1038 = vadd.f32 %v951, %v1037
    %v1039 = vpop.f32.mrf.mxu0
    %1040 = vdwg.mxu0
    %v1041 = vpack.c.bf16 %v924, %v924
    %v1042 = vpack.c.bf16 %v927, %v927
    %v1043 = vpack.c.bf16 %v1035, %v1035
    %v1044 = vpack.c.bf16 %v1038, %v1038
    %1045 = vmatprep.subr.bf16.mxu0 0
    %1046 = vmatpush1.bf16.xpose.msra.mxu0 0
    %1047 = vmatprep.subr.bf16.mxu0 0
    %1048 = vmatpush1.bf16.xpose.msra.mxu0 0
    %1049 = vmatprep.subr.bf16.mxu0 0
    %1050 = vmatpush1.bf16.xpose.msra.mxu0 0
    %1051 = vmatprep.subr.bf16.mxu0 0
    %1052 = vmatpush1.bf16.xpose.msra.mxu0 0
    %1053 = vmatprep.subr.bf16.mxu0 0
    %1054 = vmatpush1.bf16.xpose.msra.mxu0 0
    %1055 = vmatprep.subr.bf16.mxu0 0
    %1056 = vmatpush1.bf16.xpose.msra.mxu0 0
    %1057 = vmatprep.subr.bf16.mxu0 0
    %1058 = vmatpush1.bf16.xpose.msra.mxu0 0
    %1059 = vmatprep.subr.bf16.mxu0 0
    %1060 = vmatpush1.bf16.xpose.msra.mxu0 %v1043
    %1061 = vmatprep.subr.bf16.mxu0 0
    %1062 = vmatpush2.bf16.xpose.msra.mxu0 0
    %1063 = vmatprep.subr.bf16.mxu0 0
    %1064 = vmatpush2.bf16.xpose.msra.mxu0 0
    %1065 = vmatprep.subr.bf16.mxu0 0
    %1066 = vmatpush2.bf16.xpose.msra.mxu0 0
    %1067 = vmatprep.subr.bf16.mxu0 0
    %1068 = vmatpush2.bf16.xpose.msra.mxu0 0
    %1069 = vmatprep.subr.bf16.mxu0 0
    %1070 = vmatpush2.bf16.xpose.msra.mxu0 0
    %1071 = vmatprep.subr.bf16.mxu0 0
    %1072 = vmatpush2.bf16.xpose.msra.mxu0 0
    %1073 = vmatprep.subr.bf16.mxu0 0
    %1074 = vmatpush2.bf16.xpose.msra.mxu0 0
    %1075 = vmatprep.subr.bf16.mxu0 0
    %1076 = vmatpush2.bf16.xpose.msra.mxu0 0
    %1077 = vmatprep.mubr.bf16.mxu0 0
    %1078 = vmatmul.mubr.bf16.gmra.mxu0 %v1041
    %v1079 = vpop.f32.mrf.mxu0
    %v1080 = vadd.f32 0.0, %v1079
    %v1081 = vpop.f32.mrf.mxu0
    %v1082 = vpop.f32.mrf.mxu0
    %v1083 = vpop.f32.mrf.mxu0
    %1084 = vdwg.mxu0
    %1085 = vmatprep.subr.bf16.mxu0 0
    %1086 = vmatpush1.bf16.xpose.msra.mxu0 0
    %1087 = vmatprep.subr.bf16.mxu0 0
    %1088 = vmatpush1.bf16.xpose.msra.mxu0 0
    %1089 = vmatprep.subr.bf16.mxu0 0
    %1090 = vmatpush1.bf16.xpose.msra.mxu0 0
    %1091 = vmatprep.subr.bf16.mxu0 0
    %1092 = vmatpush1.bf16.xpose.msra.mxu0 0
    %1093 = vmatprep.subr.bf16.mxu0 0
    %1094 = vmatpush1.bf16.xpose.msra.mxu0 0
    %1095 = vmatprep.subr.bf16.mxu0 0
    %1096 = vmatpush1.bf16.xpose.msra.mxu0 0
    %1097 = vmatprep.subr.bf16.mxu0 0
    %1098 = vmatpush1.bf16.xpose.msra.mxu0 0
    %1099 = vmatprep.subr.bf16.mxu0 0
    %1100 = vmatpush1.bf16.xpose.msra.mxu0 %v1044
    %1101 = vmatprep.subr.bf16.mxu0 0
    %1102 = vmatpush2.bf16.xpose.msra.mxu0 0
    %1103 = vmatprep.subr.bf16.mxu0 0
    %1104 = vmatpush2.bf16.xpose.msra.mxu0 0
    %1105 = vmatprep.subr.bf16.mxu0 0
    %1106 = vmatpush2.bf16.xpose.msra.mxu0 0
    %1107 = vmatprep.subr.bf16.mxu0 0
    %1108 = vmatpush2.bf16.xpose.msra.mxu0 0
    %1109 = vmatprep.subr.bf16.mxu0 0
    %1110 = vmatpush2.bf16.xpose.msra.mxu0 0
    %1111 = vmatprep.subr.bf16.mxu0 0
    %1112 = vmatpush2.bf16.xpose.msra.mxu0 0
    %1113 = vmatprep.subr.bf16.mxu0 0
    %1114 = vmatpush2.bf16.xpose.msra.mxu0 0
    %1115 = vmatprep.subr.bf16.mxu0 0
    %1116 = vmatpush2.bf16.xpose.msra.mxu0 0
    %1117 = vmatprep.mubr.bf16.mxu0 0
    %1118 = vmatmul.mubr.bf16.gmra.mxu0 %v1042
    %v1119 = vpop.f32.mrf.mxu0
    %v1120 = vadd.f32 0.0, %v1119
    %v1121 = vpop.f32.mrf.mxu0
    %v1122 = vpop.f32.mrf.mxu0
    %v1123 = vpop.f32.mrf.mxu0
    %1124 = vdwg.mxu0
    %v1125 = vsel %vm578, %v1080, -inf
    %1126 = vmax.xlane.f32.xlu0 %v1125
    %v1127 = vpop.xlane.xlu0 %1126
    %v1128 = vsel %vm578, %v1120, -inf
    %1129 = vmax.xlane.f32.xlu0 %v1128
    %v1130 = vpop.xlane.xlu0 %1129
    %v1131 = vsub.f32 %v1080, %v1127
    %v1132 = vsub.f32 %v1120, %v1130
    %v1133 = vmul.f32 %v1131, 1.442695
    %v1134 = vpow.pop %v1133
    %v1135 = vmul.f32 %v1132, 1.442695
    %v1136 = vpow.pop %v1135
    %v1137 = vsel %vm578, %v1134, 0.0
    %1138 = vadd.xlane.f32.xlu0 %v1137
    %v1139 = vpop.xlane.xlu0 %1138
    %v1140 = vsel %vm578, %v1136, 0.0
    %1141 = vadd.xlane.f32.xlu0 %v1140
    %v1142 = vpop.xlane.xlu0 %1141
    %v1143 = vrcp.pop %v1139
    %v1144 = vrcp.pop %v1142
    %v1145 = vmul.f32 %v1134, %v1143
    %v1146 = vmul.f32 %v1136, %v1144
    %v1147 = vpack.c.bf16 %v1145, %v1145
    %v1148 = vpack.c.bf16 %v1146, %v1146
    %v1150 = vsel %vm578, %v1147, 0
    %v1153 = vsel %vm606, %v1043, 0
    %1155 = vmatprep.subr.bf16.mxu0 0
    %1156 = vmatpush1.bf16.msra.mxu0 0
    %1157 = vmatprep.subr.bf16.mxu0 0
    %1158 = vmatpush1.bf16.msra.mxu0 0
    %1159 = vmatprep.subr.bf16.mxu0 0
    %1160 = vmatpush1.bf16.msra.mxu0 0
    %1161 = vmatprep.subr.bf16.mxu0 0
    %1162 = vmatpush1.bf16.msra.mxu0 0
    %1163 = vmatprep.subr.bf16.mxu0 0
    %1164 = vmatpush1.bf16.msra.mxu0 0
    %1165 = vmatprep.subr.bf16.mxu0 0
    %1166 = vmatpush1.bf16.msra.mxu0 0
    %1167 = vmatprep.subr.bf16.mxu0 0
    %1168 = vmatpush1.bf16.msra.mxu0 0
    %1169 = vmatprep.subr.bf16.mxu0 0
    %1170 = vmatpush1.bf16.msra.mxu0 %v1153
    %1171 = vmatprep.subr.bf16.mxu0 0
    %1172 = vmatpush2.bf16.msra.mxu0 0
    %1173 = vmatprep.subr.bf16.mxu0 0
    %1174 = vmatpush2.bf16.msra.mxu0 0
    %1175 = vmatprep.subr.bf16.mxu0 0
    %1176 = vmatpush2.bf16.msra.mxu0 0
    %1177 = vmatprep.subr.bf16.mxu0 0
    %1178 = vmatpush2.bf16.msra.mxu0 0
    %1179 = vmatprep.subr.bf16.mxu0 0
    %1180 = vmatpush2.bf16.msra.mxu0 0
    %1181 = vmatprep.subr.bf16.mxu0 0
    %1182 = vmatpush2.bf16.msra.mxu0 0
    %1183 = vmatprep.subr.bf16.mxu0 0
    %1184 = vmatpush2.bf16.msra.mxu0 0
    %1185 = vmatprep.subr.bf16.mxu0 0
    %1186 = vmatpush2.bf16.msra.mxu0 0
    %1187 = vmatprep.mubr.bf16.mxu0 0
    %1188 = vmatmul.mubr.bf16.gmra.mxu0 %v1150
    %v1189 = vpop.f32.mrf.mxu0
    %v1190 = vadd.f32 0.0, %v1189
    %v1191 = vpop.f32.mrf.mxu0
    %v1192 = vpop.f32.mrf.mxu0
    %v1193 = vpop.f32.mrf.mxu0
    %1194 = vdwg.mxu0
    %v1196 = vsel %vm578, %v1148, 0
    %v1199 = vsel %vm606, %v1044, 0
    %1201 = vmatprep.subr.bf16.mxu0 0
    %1202 = vmatpush1.bf16.msra.mxu0 0
    %1203 = vmatprep.subr.bf16.mxu0 0
    %1204 = vmatpush1.bf16.msra.mxu0 0
    %1205 = vmatprep.subr.bf16.mxu0 0
    %1206 = vmatpush1.bf16.msra.mxu0 0
    %1207 = vmatprep.subr.bf16.mxu0 0
    %1208 = vmatpush1.bf16.msra.mxu0 0
    %1209 = vmatprep.subr.bf16.mxu0 0
    %1210 = vmatpush1.bf16.msra.mxu0 0
    %1211 = vmatprep.subr.bf16.mxu0 0
    %1212 = vmatpush1.bf16.msra.mxu0 0
    %1213 = vmatprep.subr.bf16.mxu0 0
    %1214 = vmatpush1.bf16.msra.mxu0 0
    %1215 = vmatprep.subr.bf16.mxu0 0
    %1216 = vmatpush1.bf16.msra.mxu0 %v1199
    %1217 = vmatprep.subr.bf16.mxu0 0
    %1218 = vmatpush2.bf16.msra.mxu0 0
    %1219 = vmatprep.subr.bf16.mxu0 0
    %1220 = vmatpush2.bf16.msra.mxu0 0
    %1221 = vmatprep.subr.bf16.mxu0 0
    %1222 = vmatpush2.bf16.msra.mxu0 0
    %1223 = vmatprep.subr.bf16.mxu0 0
    %1224 = vmatpush2.bf16.msra.mxu0 0
    %1225 = vmatprep.subr.bf16.mxu0 0
    %1226 = vmatpush2.bf16.msra.mxu0 0
    %1227 = vmatprep.subr.bf16.mxu0 0
    %1228 = vmatpush2.bf16.msra.mxu0 0
    %1229 = vmatprep.subr.bf16.mxu0 0
    %1230 = vmatpush2.bf16.msra.mxu0 0
    %1231 = vmatprep.subr.bf16.mxu0 0
    %1232 = vmatpush2.bf16.msra.mxu0 0
    %1233 = vmatprep.mubr.bf16.mxu0 0
    %1234 = vmatmul.mubr.bf16.gmra.mxu0 %v1196
    %v1235 = vpop.f32.mrf.mxu0
    %v1236 = vadd.f32 0.0, %v1235
    %v1237 = vpop.f32.mrf.mxu0
    %v1238 = vpop.f32.mrf.mxu0
    %v1239 = vpop.f32.mrf.mxu0
    %1240 = vdwg.mxu0
    %v1241 = vpack.c.bf16 %v1236, %v1190
    %v1242 = vld [vmem:[#allocation8 + $0x1e0] sm:$0xf]
    %v1243 = vld [vmem:[#allocation8 + $0x1e4] sm:$0xf]
    %v1244 = vld [vmem:[#allocation8 + $0x1e8] sm:$0xf]
    %v1245 = vld [vmem:[#allocation8 + $0x1ec] sm:$0xf]
    %v1246 = vld [vmem:[#allocation8 + $0x1f0] sm:$0xf]
    %v1247 = vld [vmem:[#allocation8 + $0x1f4] sm:$0xf]
    %v1248 = vld [vmem:[#allocation8 + $0x1f8] sm:$0xf]
    %v1249 = vld [vmem:[#allocation8 + $0x1fc] sm:$0xf]
    %v1250 = vld [vmem:[#allocation8 + $0x200] sm:$0xf]
    %v1251 = vld [vmem:[#allocation8 + $0x204] sm:$0xf]
    %v1252 = vld [vmem:[#allocation8 + $0x208] sm:$0xf]
    %v1253 = vld [vmem:[#allocation8 + $0x20c] sm:$0xf]
    %v1254 = vld [vmem:[#allocation8 + $0x210] sm:$0xf]
    %v1255 = vld [vmem:[#allocation8 + $0x214] sm:$0xf]
    %v1256 = vld [vmem:[#allocation8 + $0x218] sm:$0xf]
    %v1257 = vld [vmem:[#allocation8 + $0x21c] sm:$0xf]
    %v1258 = vld [vmem:[#allocation10 + $0xd] sm:$0x1]
    %v1259 = vlaneseq
    %v1260 = vshrl.u32 %v1259, 7
    %v1261 = vsub.s32 0, %v1260
    %v1262 = vrot.slane %v1258, %v1261
    %v1279 = vunpack.c.l.b16 %v1242
    %v1280 = vunpack.c.l.b16 %v1243
    %v1281 = vunpack.c.l.b16 %v1244
    %v1282 = vunpack.c.l.b16 %v1245
    %v1283 = vunpack.c.l.b16 %v1246
    %v1284 = vunpack.c.l.b16 %v1247
    %v1285 = vunpack.c.l.b16 %v1248
    %v1286 = vunpack.c.l.b16 %v1249
    %v1287 = vunpack.c.l.b16 %v1250
    %v1288 = vunpack.c.l.b16 %v1251
    %v1289 = vunpack.c.l.b16 %v1252
    %v1290 = vunpack.c.l.b16 %v1253
    %v1291 = vunpack.c.l.b16 %v1254
    %v1292 = vunpack.c.l.b16 %v1255
    %v1293 = vunpack.c.l.b16 %v1256
    %v1294 = vunpack.c.l.b16 %v1257
    %v1295 = vpack.c.b16 %v1280, %v1279
    %v1296 = vpack.c.b16 %v1282, %v1281
    %v1297 = vpack.c.b16 %v1284, %v1283
    %v1298 = vpack.c.b16 %v1286, %v1285
    %v1299 = vpack.c.b16 %v1288, %v1287
    %v1300 = vpack.c.b16 %v1290, %v1289
    %v1301 = vpack.c.b16 %v1292, %v1291
    %v1302 = vpack.c.b16 %v1294, %v1293
    %1311 = vmatprep.subr.bf16.mxu0 0
    %1312 = vmatpush1.bf16.msra.mxu0 %v1302
    %1313 = vmatprep.subr.bf16.mxu0 0
    %1314 = vmatpush1.bf16.msra.mxu0 %v1301
    %1315 = vmatprep.subr.bf16.mxu0 0
    %1316 = vmatpush1.bf16.msra.mxu0 %v1300
    %1317 = vmatprep.subr.bf16.mxu0 0
    %1318 = vmatpush1.bf16.msra.mxu0 %v1299
    %1319 = vmatprep.subr.bf16.mxu0 0
    %1320 = vmatpush1.bf16.msra.mxu0 %v1298
    %1321 = vmatprep.subr.bf16.mxu0 0
    %1322 = vmatpush1.bf16.msra.mxu0 %v1297
    %1323 = vmatprep.subr.bf16.mxu0 0
    %1324 = vmatpush1.bf16.msra.mxu0 %v1296
    %1325 = vmatprep.subr.bf16.mxu0 0
    %1326 = vmatpush1.bf16.msra.mxu0 %v1295
    %1327 = vmatprep.subr.bf16.mxu0 0
    %1328 = vmatpush2.bf16.msra.mxu0 0
    %1329 = vmatprep.subr.bf16.mxu0 0
    %1330 = vmatpush2.bf16.msra.mxu0 0
    %1331 = vmatprep.subr.bf16.mxu0 0
    %1332 = vmatpush2.bf16.msra.mxu0 0
    %1333 = vmatprep.subr.bf16.mxu0 0
    %1334 = vmatpush2.bf16.msra.mxu0 0
    %1335 = vmatprep.subr.bf16.mxu0 0
    %1336 = vmatpush2.bf16.msra.mxu0 0
    %1337 = vmatprep.subr.bf16.mxu0 0
    %1338 = vmatpush2.bf16.msra.mxu0 0
    %1339 = vmatprep.subr.bf16.mxu0 0
    %1340 = vmatpush2.bf16.msra.mxu0 0
    %1341 = vmatprep.subr.bf16.mxu0 0
    %1342 = vmatpush2.bf16.msra.mxu0 0
    %1343 = vmatprep.mubr.bf16.mxu0 0
    %1344 = vmatmul.mubr.bf16.gmra.mxu0 %v1241
    %v1345 = vpop.f32.mrf.mxu0
    %v1346 = vadd.f32 %v1262, %v1345
    %v1347 = vpop.f32.mrf.mxu0
    %v1348 = vpop.f32.mrf.mxu0
    %v1349 = vadd.f32 %v1262, %v1348
    %v1350 = vpop.f32.mrf.mxu0
    %1351 = vdwg.mxu0
    %v1352 = vpack.c.bf16 %v1346, %v1346
    %v1353 = vpack.c.bf16 %v1349, %v1349
    %v1354 = vld [vmem:[#allocation8 + $0x220] sm:$0xf]
    %v1355 = vld [vmem:[#allocation8 + $0x224] sm:$0xf]
    %v1356 = vld [vmem:[#allocation8 + $0x228] sm:$0xf]
    %v1357 = vld [vmem:[#allocation8 + $0x22c] sm:$0xf]
    %v1358 = vld [vmem:[#allocation8 + $0x230] sm:$0xf]
    %v1359 = vld [vmem:[#allocation8 + $0x234] sm:$0xf]
    %v1360 = vld [vmem:[#allocation8 + $0x238] sm:$0xf]
    %v1361 = vld [vmem:[#allocation8 + $0x23c] sm:$0xf]
    %v1362 = vld [vmem:[#allocation8 + $0x240] sm:$0xf]
    %v1363 = vld [vmem:[#allocation8 + $0x244] sm:$0xf]
    %v1364 = vld [vmem:[#allocation8 + $0x248] sm:$0xf]
    %v1365 = vld [vmem:[#allocation8 + $0x24c] sm:$0xf]
    %v1366 = vld [vmem:[#allocation8 + $0x250] sm:$0xf]
    %v1367 = vld [vmem:[#allocation8 + $0x254] sm:$0xf]
    %v1368 = vld [vmem:[#allocation8 + $0x258] sm:$0xf]
    %v1369 = vld [vmem:[#allocation8 + $0x25c] sm:$0xf]
    %v1370 = vld [vmem:[#allocation10 + $0xe] sm:$0x1]
    %v1371 = vlaneseq
    %v1372 = vshrl.u32 %v1371, 7
    %v1373 = vsub.s32 0, %v1372
    %v1374 = vrot.slane %v1370, %v1373
    %v1377 = vunpack.c.l.b16 %v1352
    %v1378 = vunpack.c.l.b16 %v1353
    %v1379 = vrot.slane %v1378, 7
    %v1380 = vsel %vm271, %v1379, %v1377
    %v1381 = vpack.c.b16 %v1380, %v1380
    %v1399 = vunpack.c.l.b16 %v1354
    %v1400 = vunpack.c.l.b16 %v1355
    %v1401 = vunpack.c.l.b16 %v1356
    %v1402 = vunpack.c.l.b16 %v1357
    %v1403 = vunpack.c.l.b16 %v1358
    %v1404 = vunpack.c.l.b16 %v1359
    %v1405 = vunpack.c.l.b16 %v1360
    %v1406 = vunpack.c.l.b16 %v1361
    %v1407 = vunpack.c.l.b16 %v1362
    %v1408 = vunpack.c.l.b16 %v1363
    %v1409 = vunpack.c.l.b16 %v1364
    %v1410 = vunpack.c.l.b16 %v1365
    %v1411 = vunpack.c.l.b16 %v1366
    %v1412 = vunpack.c.l.b16 %v1367
    %v1413 = vunpack.c.l.b16 %v1368
    %v1414 = vunpack.c.l.b16 %v1369
    %v1415 = vpack.c.b16 %v1400, %v1399
    %v1416 = vpack.c.b16 %v1402, %v1401
    %v1417 = vpack.c.b16 %v1404, %v1403
    %v1418 = vpack.c.b16 %v1406, %v1405
    %v1419 = vpack.c.b16 %v1408, %v1407
    %v1420 = vpack.c.b16 %v1410, %v1409
    %v1421 = vpack.c.b16 %v1412, %v1411
    %v1422 = vpack.c.b16 %v1414, %v1413
    %1431 = vmatprep.subr.bf16.mxu0 0
    %1432 = vmatpush1.bf16.msra.mxu0 %v1422
    %1433 = vmatprep.subr.bf16.mxu0 0
    %1434 = vmatpush1.bf16.msra.mxu0 %v1421
    %1435 = vmatprep.subr.bf16.mxu0 0
    %1436 = vmatpush1.bf16.msra.mxu0 %v1420
    %1437 = vmatprep.subr.bf16.mxu0 0
    %1438 = vmatpush1.bf16.msra.mxu0 %v1419
    %1439 = vmatprep.subr.bf16.mxu0 0
    %1440 = vmatpush1.bf16.msra.mxu0 %v1418
    %1441 = vmatprep.subr.bf16.mxu0 0
    %1442 = vmatpush1.bf16.msra.mxu0 %v1417
    %1443 = vmatprep.subr.bf16.mxu0 0
    %1444 = vmatpush1.bf16.msra.mxu0 %v1416
    %1445 = vmatprep.subr.bf16.mxu0 0
    %1446 = vmatpush1.bf16.msra.mxu0 %v1415
    %1447 = vmatprep.subr.bf16.mxu0 0
    %1448 = vmatpush2.bf16.msra.mxu0 0
    %1449 = vmatprep.subr.bf16.mxu0 0
    %1450 = vmatpush2.bf16.msra.mxu0 0
    %1451 = vmatprep.subr.bf16.mxu0 0
    %1452 = vmatpush2.bf16.msra.mxu0 0
    %1453 = vmatprep.subr.bf16.mxu0 0
    %1454 = vmatpush2.bf16.msra.mxu0 0
    %1455 = vmatprep.subr.bf16.mxu0 0
    %1456 = vmatpush2.bf16.msra.mxu0 0
    %1457 = vmatprep.subr.bf16.mxu0 0
    %1458 = vmatpush2.bf16.msra.mxu0 0
    %1459 = vmatprep.subr.bf16.mxu0 0
    %1460 = vmatpush2.bf16.msra.mxu0 0
    %1461 = vmatprep.subr.bf16.mxu0 0
    %1462 = vmatpush2.bf16.msra.mxu0 0
    %1463 = vmatprep.mubr.bf16.mxu0 0
    %1464 = vmatmul.mubr.bf16.gmra.mxu0 %v1381
    %v1465 = vpop.f32.mrf.mxu0
    %v1466 = vadd.f32 %v1374, %v1465
    %v1467 = vpop.f32.mrf.mxu0
    %v1468 = vpop.f32.mrf.mxu0
    %v1469 = vpop.f32.mrf.mxu0
    %1470 = vdwg.mxu0
    %vm1471 = vcmask 1041408
    %v1472 = vsel %vm1471, %v1466, 0.0
    %v1473 = vrot.slane %v1472, 4
    %v1474 = vadd.f32 %v1472, %v1473
    %v1475 = vrot.slane %v1474, 2
    %v1476 = vadd.f32 %v1474, %v1475
    %v1477 = vrot.slane %v1476, 1
    %v1478 = vadd.f32 %v1476, %v1477
    %v1479 = vrcp.pop 2.0
    %v1480 = vmul.f32 %v1478, %v1479
    %v1481 = vsub.f32 %v1466, %v1480
    %v1482 = vmul.f32 %v1481, %v1481
    %v1483 = vsel %vm1471, %v1482, 0.0
    %v1484 = vrot.slane %v1483, 4
    %v1485 = vadd.f32 %v1483, %v1484
    %v1486 = vrot.slane %v1485, 2
    %v1487 = vadd.f32 %v1485, %v1486
    %v1488 = vrot.slane %v1487, 1
    %v1489 = vadd.f32 %v1487, %v1488
    %v1490 = vmul.f32 %v1489, %v1479
    %v1491 = vadd.f32 %v1490, 1e-05
    %v1492 = vrsqrt.pop %v1491
    %v1493 = vmul.f32 %v1481, %v1492
    %v1494 = vld [vmem:[#allocation10 + $0xf] sm:$0x1]
    %v1495 = vlaneseq
    %v1496 = vshrl.u32 %v1495, 7
    %v1497 = vsub.s32 0, %v1496
    %v1498 = vrot.slane %v1494, %v1497
    %v1499 = vmul.f32 %v1493, %v1498
    %v1500 = vld [vmem:[#allocation10 + $0x10] sm:$0x1]
    %v1501 = vlaneseq
    %v1502 = vshrl.u32 %v1501, 7
    %v1503 = vsub.s32 0, %v1502
    %v1504 = vrot.slane %v1500, %v1503
    %v1505 = vadd.f32 %v1499, %v1504
    %v1506 = vmax.f32 %v1505, 0.0
    %v1507 = vpack.c.bf16 %v93, %v93
    %v1508 = vld [vmem:[#allocation8 + $0x20] sm:$0xf]
    %v1509 = vld [vmem:[#allocation8 + $0x24] sm:$0xf]
    %v1510 = vld [vmem:[#allocation8 + $0x28] sm:$0xf]
    %v1511 = vld [vmem:[#allocation8 + $0x2c] sm:$0xf]
    %v1512 = vld [vmem:[#allocation8 + $0x30] sm:$0xf]
    %v1513 = vld [vmem:[#allocation8 + $0x34] sm:$0xf]
    %v1514 = vld [vmem:[#allocation8 + $0x38] sm:$0xf]
    %v1515 = vld [vmem:[#allocation8 + $0x3c] sm:$0xf]
    %v1516 = vld [vmem:[#allocation8 + $0x40] sm:$0xf]
    %v1517 = vld [vmem:[#allocation8 + $0x44] sm:$0xf]
    %v1518 = vld [vmem:[#allocation8 + $0x48] sm:$0xf]
    %v1519 = vld [vmem:[#allocation8 + $0x4c] sm:$0xf]
    %v1520 = vld [vmem:[#allocation8 + $0x50] sm:$0xf]
    %v1521 = vld [vmem:[#allocation8 + $0x54] sm:$0xf]
    %v1522 = vld [vmem:[#allocation8 + $0x58] sm:$0xf]
    %v1523 = vld [vmem:[#allocation8 + $0x5c] sm:$0xf]
    %v1524 = vld [vmem:[#allocation10 + $0x1] sm:$0x1]
    %v1525 = vlaneseq
    %v1526 = vshrl.u32 %v1525, 7
    %v1527 = vsub.s32 0, %v1526
    %v1528 = vrot.slane %v1524, %v1527
    %v1545 = vunpack.c.l.b16 %v1508
    %v1546 = vunpack.c.l.b16 %v1509
    %v1547 = vunpack.c.l.b16 %v1510
    %v1548 = vunpack.c.l.b16 %v1511
    %v1549 = vunpack.c.l.b16 %v1512
    %v1550 = vunpack.c.l.b16 %v1513
    %v1551 = vunpack.c.l.b16 %v1514
    %v1552 = vunpack.c.l.b16 %v1515
    %v1553 = vunpack.c.l.b16 %v1516
    %v1554 = vunpack.c.l.b16 %v1517
    %v1555 = vunpack.c.l.b16 %v1518
    %v1556 = vunpack.c.l.b16 %v1519
    %v1557 = vunpack.c.l.b16 %v1520
    %v1558 = vunpack.c.l.b16 %v1521
    %v1559 = vunpack.c.l.b16 %v1522
    %v1560 = vunpack.c.l.b16 %v1523
    %v1561 = vpack.c.b16 %v1546, %v1545
    %v1562 = vpack.c.b16 %v1548, %v1547
    %v1563 = vpack.c.b16 %v1550, %v1549
    %v1564 = vpack.c.b16 %v1552, %v1551
    %v1565 = vpack.c.b16 %v1554, %v1553
    %v1566 = vpack.c.b16 %v1556, %v1555
    %v1567 = vpack.c.b16 %v1558, %v1557
    %v1568 = vpack.c.b16 %v1560, %v1559
    %1577 = vmatprep.subr.bf16.mxu0 0
    %1578 = vmatpush1.bf16.msra.mxu0 %v1568
    %1579 = vmatprep.subr.bf16.mxu0 0
    %1580 = vmatpush1.bf16.msra.mxu0 %v1567
    %1581 = vmatprep.subr.bf16.mxu0 0
    %1582 = vmatpush1.bf16.msra.mxu0 %v1566
    %1583 = vmatprep.subr.bf16.mxu0 0
    %1584 = vmatpush1.bf16.msra.mxu0 %v1565
    %1585 = vmatprep.subr.bf16.mxu0 0
    %1586 = vmatpush1.bf16.msra.mxu0 %v1564
    %1587 = vmatprep.subr.bf16.mxu0 0
    %1588 = vmatpush1.bf16.msra.mxu0 %v1563
    %1589 = vmatprep.subr.bf16.mxu0 0
    %1590 = vmatpush1.bf16.msra.mxu0 %v1562
    %1591 = vmatprep.subr.bf16.mxu0 0
    %1592 = vmatpush1.bf16.msra.mxu0 %v1561
    %1593 = vmatprep.subr.bf16.mxu0 0
    %1594 = vmatpush2.bf16.msra.mxu0 0
    %1595 = vmatprep.subr.bf16.mxu0 0
    %1596 = vmatpush2.bf16.msra.mxu0 0
    %1597 = vmatprep.subr.bf16.mxu0 0
    %1598 = vmatpush2.bf16.msra.mxu0 0
    %1599 = vmatprep.subr.bf16.mxu0 0
    %1600 = vmatpush2.bf16.msra.mxu0 0
    %1601 = vmatprep.subr.bf16.mxu0 0
    %1602 = vmatpush2.bf16.msra.mxu0 0
    %1603 = vmatprep.subr.bf16.mxu0 0
    %1604 = vmatpush2.bf16.msra.mxu0 0
    %1605 = vmatprep.subr.bf16.mxu0 0
    %1606 = vmatpush2.bf16.msra.mxu0 0
    %1607 = vmatprep.subr.bf16.mxu0 0
    %1608 = vmatpush2.bf16.msra.mxu0 0
    %1609 = vmatprep.mubr.bf16.mxu0 0
    %1610 = vmatmul.mubr.bf16.gmra.mxu0 %v1507
    %v1611 = vpop.f32.mrf.mxu0
    %v1612 = vadd.f32 %v1528, %v1611
    %v1613 = vpop.f32.mrf.mxu0
    %v1614 = vpop.f32.mrf.mxu0
    %v1615 = vpop.f32.mrf.mxu0
    %1616 = vdwg.mxu0
    %v1617 = vpack.c.bf16 %v1612, %v1612
    %v1618 = vld [vmem:[#allocation8 + $0x60] sm:$0xf]
    %v1619 = vld [vmem:[#allocation8 + $0x64] sm:$0xf]
    %v1620 = vld [vmem:[#allocation8 + $0x68] sm:$0xf]
    %v1621 = vld [vmem:[#allocation8 + $0x6c] sm:$0xf]
    %v1622 = vld [vmem:[#allocation8 + $0x70] sm:$0xf]
    %v1623 = vld [vmem:[#allocation8 + $0x74] sm:$0xf]
    %v1624 = vld [vmem:[#allocation8 + $0x78] sm:$0xf]
    %v1625 = vld [vmem:[#allocation8 + $0x7c] sm:$0xf]
    %v1626 = vld [vmem:[#allocation8 + $0x80] sm:$0xf]
    %v1627 = vld [vmem:[#allocation8 + $0x84] sm:$0xf]
    %v1628 = vld [vmem:[#allocation8 + $0x88] sm:$0xf]
    %v1629 = vld [vmem:[#allocation8 + $0x8c] sm:$0xf]
    %v1630 = vld [vmem:[#allocation8 + $0x90] sm:$0xf]
    %v1631 = vld [vmem:[#allocation8 + $0x94] sm:$0xf]
    %v1632 = vld [vmem:[#allocation8 + $0x98] sm:$0xf]
    %v1633 = vld [vmem:[#allocation8 + $0x9c] sm:$0xf]
    %v1634 = vld [vmem:[#allocation10 + $0x2] sm:$0x1]
    %v1635 = vlaneseq
    %v1636 = vshrl.u32 %v1635, 7
    %v1637 = vsub.s32 0, %v1636
    %v1638 = vrot.slane %v1634, %v1637
    %v1655 = vunpack.c.l.b16 %v1618
    %v1656 = vunpack.c.l.b16 %v1619
    %v1657 = vunpack.c.l.b16 %v1620
    %v1658 = vunpack.c.l.b16 %v1621
    %v1659 = vunpack.c.l.b16 %v1622
    %v1660 = vunpack.c.l.b16 %v1623
    %v1661 = vunpack.c.l.b16 %v1624
    %v1662 = vunpack.c.l.b16 %v1625
    %v1663 = vunpack.c.l.b16 %v1626
    %v1664 = vunpack.c.l.b16 %v1627
    %v1665 = vunpack.c.l.b16 %v1628
    %v1666 = vunpack.c.l.b16 %v1629
    %v1667 = vunpack.c.l.b16 %v1630
    %v1668 = vunpack.c.l.b16 %v1631
    %v1669 = vunpack.c.l.b16 %v1632
    %v1670 = vunpack.c.l.b16 %v1633
    %v1671 = vpack.c.b16 %v1656, %v1655
    %v1672 = vpack.c.b16 %v1658, %v1657
    %v1673 = vpack.c.b16 %v1660, %v1659
    %v1674 = vpack.c.b16 %v1662, %v1661
    %v1675 = vpack.c.b16 %v1664, %v1663
    %v1676 = vpack.c.b16 %v1666, %v1665
    %v1677 = vpack.c.b16 %v1668, %v1667
    %v1678 = vpack.c.b16 %v1670, %v1669
    %1687 = vmatprep.subr.bf16.mxu0 0
    %1688 = vmatpush1.bf16.msra.mxu0 %v1678
    %1689 = vmatprep.subr.bf16.mxu0 0
    %1690 = vmatpush1.bf16.msra.mxu0 %v1677
    %1691 = vmatprep.subr.bf16.mxu0 0
    %1692 = vmatpush1.bf16.msra.mxu0 %v1676
    %1693 = vmatprep.subr.bf16.mxu0 0
    %1694 = vmatpush1.bf16.msra.mxu0 %v1675
    %1695 = vmatprep.subr.bf16.mxu0 0
    %1696 = vmatpush1.bf16.msra.mxu0 %v1674
    %1697 = vmatprep.subr.bf16.mxu0 0
    %1698 = vmatpush1.bf16.msra.mxu0 %v1673
    %1699 = vmatprep.subr.bf16.mxu0 0
    %1700 = vmatpush1.bf16.msra.mxu0 %v1672
    %1701 = vmatprep.subr.bf16.mxu0 0
    %1702 = vmatpush1.bf16.msra.mxu0 %v1671
    %1703 = vmatprep.subr.bf16.mxu0 0
    %1704 = vmatpush2.bf16.msra.mxu0 0
    %1705 = vmatprep.subr.bf16.mxu0 0
    %1706 = vmatpush2.bf16.msra.mxu0 0
    %1707 = vmatprep.subr.bf16.mxu0 0
    %1708 = vmatpush2.bf16.msra.mxu0 0
    %1709 = vmatprep.subr.bf16.mxu0 0
    %1710 = vmatpush2.bf16.msra.mxu0 0
    %1711 = vmatprep.subr.bf16.mxu0 0
    %1712 = vmatpush2.bf16.msra.mxu0 0
    %1713 = vmatprep.subr.bf16.mxu0 0
    %1714 = vmatpush2.bf16.msra.mxu0 0
    %1715 = vmatprep.subr.bf16.mxu0 0
    %1716 = vmatpush2.bf16.msra.mxu0 0
    %1717 = vmatprep.subr.bf16.mxu0 0
    %1718 = vmatpush2.bf16.msra.mxu0 0
    %1719 = vmatprep.mubr.bf16.mxu0 0
    %1720 = vmatmul.mubr.bf16.gmra.mxu0 %v1617
    %v1721 = vpop.f32.mrf.mxu0
    %v1722 = vadd.f32 %v1638, %v1721
    %v1723 = vpop.f32.mrf.mxu0
    %v1724 = vpop.f32.mrf.mxu0
    %v1725 = vpop.f32.mrf.mxu0
    %1726 = vdwg.mxu0
    %v1727 = vsel %vm1471, %v1722, 0.0
    %v1728 = vrot.slane %v1727, 4
    %v1729 = vadd.f32 %v1727, %v1728
    %v1730 = vrot.slane %v1729, 2
    %v1731 = vadd.f32 %v1729, %v1730
    %v1732 = vrot.slane %v1731, 1
    %v1733 = vadd.f32 %v1731, %v1732
    %v1734 = vmul.f32 %v1733, %v1479
    %v1735 = vsub.f32 %v1722, %v1734
    %v1736 = vmul.f32 %v1735, %v1735
    %v1737 = vsel %vm1471, %v1736, 0.0
    %v1738 = vrot.slane %v1737, 4
    %v1739 = vadd.f32 %v1737, %v1738
    %v1740 = vrot.slane %v1739, 2
    %v1741 = vadd.f32 %v1739, %v1740
    %v1742 = vrot.slane %v1741, 1
    %v1743 = vadd.f32 %v1741, %v1742
    %v1744 = vmul.f32 %v1743, %v1479
    %v1745 = vadd.f32 %v1744, 1e-05
    %v1746 = vrsqrt.pop %v1745
    %v1747 = vmul.f32 %v1735, %v1746
    %v1748 = vld [vmem:[#allocation10 + $0x3] sm:$0x1]
    %v1749 = vlaneseq
    %v1750 = vshrl.u32 %v1749, 7
    %v1751 = vsub.s32 0, %v1750
    %v1752 = vrot.slane %v1748, %v1751
    %v1753 = vmul.f32 %v1747, %v1752
    %v1754 = vld [vmem:[#allocation10 + $0x4] sm:$0x1]
    %v1755 = vlaneseq
    %v1756 = vshrl.u32 %v1755, 7
    %v1757 = vsub.s32 0, %v1756
    %v1758 = vrot.slane %v1754, %v1757
    %v1759 = vadd.f32 %v1753, %v1758
    %v1760 = vmax.f32 %v1759, 0.0
    %v1761 = vpack.c.bf16 %v1760, %v1760
    %v1762 = vld [vmem:[#allocation8 + $0xa0] sm:$0xf]
    %v1763 = vld [vmem:[#allocation8 + $0xa4] sm:$0xf]
    %v1764 = vld [vmem:[#allocation8 + $0xa8] sm:$0xf]
    %v1765 = vld [vmem:[#allocation8 + $0xac] sm:$0xf]
    %v1766 = vld [vmem:[#allocation8 + $0xb0] sm:$0xf]
    %v1767 = vld [vmem:[#allocation8 + $0xb4] sm:$0xf]
    %v1768 = vld [vmem:[#allocation8 + $0xb8] sm:$0xf]
    %v1769 = vld [vmem:[#allocation8 + $0xbc] sm:$0xf]
    %v1770 = vld [vmem:[#allocation8 + $0xc0] sm:$0xf]
    %v1771 = vld [vmem:[#allocation8 + $0xc4] sm:$0xf]
    %v1772 = vld [vmem:[#allocation8 + $0xc8] sm:$0xf]
    %v1773 = vld [vmem:[#allocation8 + $0xcc] sm:$0xf]
    %v1774 = vld [vmem:[#allocation8 + $0xd0] sm:$0xf]
    %v1775 = vld [vmem:[#allocation8 + $0xd4] sm:$0xf]
    %v1776 = vld [vmem:[#allocation8 + $0xd8] sm:$0xf]
    %v1777 = vld [vmem:[#allocation8 + $0xdc] sm:$0xf]
    %v1778 = vld [vmem:[#allocation10 + $0x5] sm:$0x1]
    %v1779 = vlaneseq
    %v1780 = vshrl.u32 %v1779, 7
    %v1781 = vsub.s32 0, %v1780
    %v1782 = vrot.slane %v1778, %v1781
    %v1799 = vunpack.c.l.b16 %v1762
    %v1800 = vunpack.c.l.b16 %v1763
    %v1801 = vunpack.c.l.b16 %v1764
    %v1802 = vunpack.c.l.b16 %v1765
    %v1803 = vunpack.c.l.b16 %v1766
    %v1804 = vunpack.c.l.b16 %v1767
    %v1805 = vunpack.c.l.b16 %v1768
    %v1806 = vunpack.c.l.b16 %v1769
    %v1807 = vunpack.c.l.b16 %v1770
    %v1808 = vunpack.c.l.b16 %v1771
    %v1809 = vunpack.c.l.b16 %v1772
    %v1810 = vunpack.c.l.b16 %v1773
    %v1811 = vunpack.c.l.b16 %v1774
    %v1812 = vunpack.c.l.b16 %v1775
    %v1813 = vunpack.c.l.b16 %v1776
    %v1814 = vunpack.c.l.b16 %v1777
    %v1815 = vpack.c.b16 %v1800, %v1799
    %v1816 = vpack.c.b16 %v1802, %v1801
    %v1817 = vpack.c.b16 %v1804, %v1803
    %v1818 = vpack.c.b16 %v1806, %v1805
    %v1819 = vpack.c.b16 %v1808, %v1807
    %v1820 = vpack.c.b16 %v1810, %v1809
    %v1821 = vpack.c.b16 %v1812, %v1811
    %v1822 = vpack.c.b16 %v1814, %v1813
    %1831 = vmatprep.subr.bf16.mxu0 0
    %1832 = vmatpush1.bf16.msra.mxu0 %v1822
    %1833 = vmatprep.subr.bf16.mxu0 0
    %1834 = vmatpush1.bf16.msra.mxu0 %v1821
    %1835 = vmatprep.subr.bf16.mxu0 0
    %1836 = vmatpush1.bf16.msra.mxu0 %v1820
    %1837 = vmatprep.subr.bf16.mxu0 0
    %1838 = vmatpush1.bf16.msra.mxu0 %v1819
    %1839 = vmatprep.subr.bf16.mxu0 0
    %1840 = vmatpush1.bf16.msra.mxu0 %v1818
    %1841 = vmatprep.subr.bf16.mxu0 0
    %1842 = vmatpush1.bf16.msra.mxu0 %v1817
    %1843 = vmatprep.subr.bf16.mxu0 0
    %1844 = vmatpush1.bf16.msra.mxu0 %v1816
    %1845 = vmatprep.subr.bf16.mxu0 0
    %1846 = vmatpush1.bf16.msra.mxu0 %v1815
    %1847 = vmatprep.subr.bf16.mxu0 0
    %1848 = vmatpush2.bf16.msra.mxu0 0
    %1849 = vmatprep.subr.bf16.mxu0 0
    %1850 = vmatpush2.bf16.msra.mxu0 0
    %1851 = vmatprep.subr.bf16.mxu0 0
    %1852 = vmatpush2.bf16.msra.mxu0 0
    %1853 = vmatprep.subr.bf16.mxu0 0
    %1854 = vmatpush2.bf16.msra.mxu0 0
    %1855 = vmatprep.subr.bf16.mxu0 0
    %1856 = vmatpush2.bf16.msra.mxu0 0
    %1857 = vmatprep.subr.bf16.mxu0 0
    %1858 = vmatpush2.bf16.msra.mxu0 0
    %1859 = vmatprep.subr.bf16.mxu0 0
    %1860 = vmatpush2.bf16.msra.mxu0 0
    %1861 = vmatprep.subr.bf16.mxu0 0
    %1862 = vmatpush2.bf16.msra.mxu0 0
    %1863 = vmatprep.mubr.bf16.mxu0 0
    %1864 = vmatmul.mubr.bf16.gmra.mxu0 %v1761
    %v1865 = vpop.f32.mrf.mxu0
    %v1866 = vadd.f32 %v1782, %v1865
    %v1867 = vpop.f32.mrf.mxu0
    %v1868 = vpop.f32.mrf.mxu0
    %v1869 = vpop.f32.mrf.mxu0
    %1870 = vdwg.mxu0
    %v1871 = vsel %vm1471, %v1866, 0.0
    %v1872 = vrot.slane %v1871, 4
    %v1873 = vadd.f32 %v1871, %v1872
    %v1874 = vrot.slane %v1873, 2
    %v1875 = vadd.f32 %v1873, %v1874
    %v1876 = vrot.slane %v1875, 1
    %v1877 = vadd.f32 %v1875, %v1876
    %v1878 = vmul.f32 %v1877, %v1479
    %v1879 = vsub.f32 %v1866, %v1878
    %v1880 = vmul.f32 %v1879, %v1879
    %v1881 = vsel %vm1471, %v1880, 0.0
    %v1882 = vrot.slane %v1881, 4
    %v1883 = vadd.f32 %v1881, %v1882
    %v1884 = vrot.slane %v1883, 2
    %v1885 = vadd.f32 %v1883, %v1884
    %v1886 = vrot.slane %v1885, 1
    %v1887 = vadd.f32 %v1885, %v1886
    %v1888 = vmul.f32 %v1887, %v1479
    %v1889 = vadd.f32 %v1888, 1e-05
    %v1890 = vrsqrt.pop %v1889
    %v1891 = vmul.f32 %v1879, %v1890
    %v1892 = vld [vmem:[#allocation10 + $0x6] sm:$0x1]
    %v1893 = vlaneseq
    %v1894 = vshrl.u32 %v1893, 7
    %v1895 = vsub.s32 0, %v1894
    %v1896 = vrot.slane %v1892, %v1895
    %v1897 = vmul.f32 %v1891, %v1896
    %v1898 = vld [vmem:[#allocation10 + $0x7] sm:$0x1]
    %v1899 = vlaneseq
    %v1900 = vshrl.u32 %v1899, 7
    %v1901 = vsub.s32 0, %v1900
    %v1902 = vrot.slane %v1898, %v1901
    %v1903 = vadd.f32 %v1897, %v1902
    %v1904 = vmax.f32 %v1903, 0.0
    %1906 = vset.pattern.permute.xlu0 64
    %1907 = vperm.xlu0 %1906, %v191
    %v1908 = vpop.permute.xlu0 %1907
    %1910 = vset.pattern.permute.xlu0 64
    %1911 = vperm.xlu0 %1910, %v192
    %v1912 = vpop.permute.xlu0 %1911
    %v1913 = vrot.slane %v1912, 7
    %v1914 = vsel %vm271, %v1913, %v1908
    %v1916 = vmul.f32 %v1506, %v1914
    %v1917 = vpack.c.bf16 %v1916, %v1916
    %v1918 = vld [vmem:[#allocation8 + $0x260] sm:$0xf]
    %v1919 = vld [vmem:[#allocation8 + $0x264] sm:$0xf]
    %v1920 = vld [vmem:[#allocation8 + $0x268] sm:$0xf]
    %v1921 = vld [vmem:[#allocation8 + $0x26c] sm:$0xf]
    %v1922 = vld [vmem:[#allocation8 + $0x270] sm:$0xf]
    %v1923 = vld [vmem:[#allocation8 + $0x274] sm:$0xf]
    %v1924 = vld [vmem:[#allocation8 + $0x278] sm:$0xf]
    %v1925 = vld [vmem:[#allocation8 + $0x27c] sm:$0xf]
    %v1926 = vld [vmem:[#allocation8 + $0x280] sm:$0xf]
    %v1927 = vld [vmem:[#allocation8 + $0x284] sm:$0xf]
    %v1928 = vld [vmem:[#allocation8 + $0x288] sm:$0xf]
    %v1929 = vld [vmem:[#allocation8 + $0x28c] sm:$0xf]
    %v1930 = vld [vmem:[#allocation8 + $0x290] sm:$0xf]
    %v1931 = vld [vmem:[#allocation8 + $0x294] sm:$0xf]
    %v1932 = vld [vmem:[#allocation8 + $0x298] sm:$0xf]
    %v1933 = vld [vmem:[#allocation8 + $0x29c] sm:$0xf]
    %v1934 = vpack.c.bf16 %v1904, %v1904
    %v1935 = vld [vmem:[#allocation8 + $0x2a0] sm:$0xf]
    %v1936 = vld [vmem:[#allocation8 + $0x2a4] sm:$0xf]
    %v1937 = vld [vmem:[#allocation8 + $0x2a8] sm:$0xf]
    %v1938 = vld [vmem:[#allocation8 + $0x2ac] sm:$0xf]
    %v1939 = vld [vmem:[#allocation8 + $0x2b0] sm:$0xf]
    %v1940 = vld [vmem:[#allocation8 + $0x2b4] sm:$0xf]
    %v1941 = vld [vmem:[#allocation8 + $0x2b8] sm:$0xf]
    %v1942 = vld [vmem:[#allocation8 + $0x2bc] sm:$0xf]
    %v1943 = vld [vmem:[#allocation8 + $0x2c0] sm:$0xf]
    %v1944 = vld [vmem:[#allocation8 + $0x2c4] sm:$0xf]
    %v1945 = vld [vmem:[#allocation8 + $0x2c8] sm:$0xf]
    %v1946 = vld [vmem:[#allocation8 + $0x2cc] sm:$0xf]
    %v1947 = vld [vmem:[#allocation8 + $0x2d0] sm:$0xf]
    %v1948 = vld [vmem:[#allocation8 + $0x2d4] sm:$0xf]
    %v1949 = vld [vmem:[#allocation8 + $0x2d8] sm:$0xf]
    %v1950 = vld [vmem:[#allocation8 + $0x2dc] sm:$0xf]
    %v1967 = vunpack.c.l.b16 %v1935
    %v1968 = vunpack.c.l.b16 %v1936
    %v1969 = vunpack.c.l.b16 %v1937
    %v1970 = vunpack.c.l.b16 %v1938
    %v1971 = vunpack.c.l.b16 %v1939
    %v1972 = vunpack.c.l.b16 %v1940
    %v1973 = vunpack.c.l.b16 %v1941
    %v1974 = vunpack.c.l.b16 %v1942
    %v1975 = vunpack.c.l.b16 %v1943
    %v1976 = vunpack.c.l.b16 %v1944
    %v1977 = vunpack.c.l.b16 %v1945
    %v1978 = vunpack.c.l.b16 %v1946
    %v1979 = vunpack.c.l.b16 %v1947
    %v1980 = vunpack.c.l.b16 %v1948
    %v1981 = vunpack.c.l.b16 %v1949
    %v1982 = vunpack.c.l.b16 %v1950
    %v1983 = vpack.c.b16 %v1968, %v1967
    %v1984 = vpack.c.b16 %v1970, %v1969
    %v1985 = vpack.c.b16 %v1972, %v1971
    %v1986 = vpack.c.b16 %v1974, %v1973
    %v1987 = vpack.c.b16 %v1976, %v1975
    %v1988 = vpack.c.b16 %v1978, %v1977
    %v1989 = vpack.c.b16 %v1980, %v1979
    %v1990 = vpack.c.b16 %v1982, %v1981
    %1999 = vmatprep.subr.bf16.mxu0 0
    %2000 = vmatpush1.bf16.msra.mxu0 %v1990
    %2001 = vmatprep.subr.bf16.mxu0 0
    %2002 = vmatpush1.bf16.msra.mxu0 %v1989
    %2003 = vmatprep.subr.bf16.mxu0 0
    %2004 = vmatpush1.bf16.msra.mxu0 %v1988
    %2005 = vmatprep.subr.bf16.mxu0 0
    %2006 = vmatpush1.bf16.msra.mxu0 %v1987
    %2007 = vmatprep.subr.bf16.mxu0 0
    %2008 = vmatpush1.bf16.msra.mxu0 %v1986
    %2009 = vmatprep.subr.bf16.mxu0 0
    %2010 = vmatpush1.bf16.msra.mxu0 %v1985
    %2011 = vmatprep.subr.bf16.mxu0 0
    %2012 = vmatpush1.bf16.msra.mxu0 %v1984
    %2013 = vmatprep.subr.bf16.mxu0 0
    %2014 = vmatpush1.bf16.msra.mxu0 %v1983
    %2015 = vmatprep.subr.bf16.mxu0 0
    %2016 = vmatpush2.bf16.msra.mxu0 0
    %2017 = vmatprep.subr.bf16.mxu0 0
    %2018 = vmatpush2.bf16.msra.mxu0 0
    %2019 = vmatprep.subr.bf16.mxu0 0
    %2020 = vmatpush2.bf16.msra.mxu0 0
    %2021 = vmatprep.subr.bf16.mxu0 0
    %2022 = vmatpush2.bf16.msra.mxu0 0
    %2023 = vmatprep.subr.bf16.mxu0 0
    %2024 = vmatpush2.bf16.msra.mxu0 0
    %2025 = vmatprep.subr.bf16.mxu0 0
    %2026 = vmatpush2.bf16.msra.mxu0 0
    %2027 = vmatprep.subr.bf16.mxu0 0
    %2028 = vmatpush2.bf16.msra.mxu0 0
    %2029 = vmatprep.subr.bf16.mxu0 0
    %2030 = vmatpush2.bf16.msra.mxu0 0
    %2031 = vmatprep.mubr.bf16.mxu0 0
    %2032 = vmatmul.mubr.bf16.gmra.mxu0 %v1934
    %v2033 = vpop.f32.mrf.mxu0
    %v2034 = vadd.f32 0.0, %v2033
    %v2035 = vpop.f32.mrf.mxu0
    %v2036 = vpop.f32.mrf.mxu0
    %v2037 = vpop.f32.mrf.mxu0
    %2038 = vdwg.mxu0
    %v2055 = vunpack.c.l.b16 %v1918
    %v2056 = vunpack.c.l.b16 %v1919
    %v2057 = vunpack.c.l.b16 %v1920
    %v2058 = vunpack.c.l.b16 %v1921
    %v2059 = vunpack.c.l.b16 %v1922
    %v2060 = vunpack.c.l.b16 %v1923
    %v2061 = vunpack.c.l.b16 %v1924
    %v2062 = vunpack.c.l.b16 %v1925
    %v2063 = vunpack.c.l.b16 %v1926
    %v2064 = vunpack.c.l.b16 %v1927
    %v2065 = vunpack.c.l.b16 %v1928
    %v2066 = vunpack.c.l.b16 %v1929
    %v2067 = vunpack.c.l.b16 %v1930
    %v2068 = vunpack.c.l.b16 %v1931
    %v2069 = vunpack.c.l.b16 %v1932
    %v2070 = vunpack.c.l.b16 %v1933
    %v2071 = vpack.c.b16 %v2056, %v2055
    %v2072 = vpack.c.b16 %v2058, %v2057
    %v2073 = vpack.c.b16 %v2060, %v2059
    %v2074 = vpack.c.b16 %v2062, %v2061
    %v2075 = vpack.c.b16 %v2064, %v2063
    %v2076 = vpack.c.b16 %v2066, %v2065
    %v2077 = vpack.c.b16 %v2068, %v2067
    %v2078 = vpack.c.b16 %v2070, %v2069
    %2087 = vmatprep.subr.bf16.mxu0 0
    %2088 = vmatpush1.bf16.msra.mxu0 %v2078
    %2089 = vmatprep.subr.bf16.mxu0 0
    %2090 = vmatpush1.bf16.msra.mxu0 %v2077
    %2091 = vmatprep.subr.bf16.mxu0 0
    %2092 = vmatpush1.bf16.msra.mxu0 %v2076
    %2093 = vmatprep.subr.bf16.mxu0 0
    %2094 = vmatpush1.bf16.msra.mxu0 %v2075
    %2095 = vmatprep.subr.bf16.mxu0 0
    %2096 = vmatpush1.bf16.msra.mxu0 %v2074
    %2097 = vmatprep.subr.bf16.mxu0 0
    %2098 = vmatpush1.bf16.msra.mxu0 %v2073
    %2099 = vmatprep.subr.bf16.mxu0 0
    %2100 = vmatpush1.bf16.msra.mxu0 %v2072
    %2101 = vmatprep.subr.bf16.mxu0 0
    %2102 = vmatpush1.bf16.msra.mxu0 %v2071
    %2103 = vmatprep.subr.bf16.mxu0 0
    %2104 = vmatpush2.bf16.msra.mxu0 0
    %2105 = vmatprep.subr.bf16.mxu0 0
    %2106 = vmatpush2.bf16.msra.mxu0 0
    %2107 = vmatprep.subr.bf16.mxu0 0
    %2108 = vmatpush2.bf16.msra.mxu0 0
    %2109 = vmatprep.subr.bf16.mxu0 0
    %2110 = vmatpush2.bf16.msra.mxu0 0
    %2111 = vmatprep.subr.bf16.mxu0 0
    %2112 = vmatpush2.bf16.msra.mxu0 0
    %2113 = vmatprep.subr.bf16.mxu0 0
    %2114 = vmatpush2.bf16.msra.mxu0 0
    %2115 = vmatprep.subr.bf16.mxu0 0
    %2116 = vmatpush2.bf16.msra.mxu0 0
    %2117 = vmatprep.subr.bf16.mxu0 0
    %2118 = vmatpush2.bf16.msra.mxu0 0
    %2119 = vmatprep.mubr.bf16.mxu0 0
    %2120 = vmatmul.mubr.bf16.gmra.mxu0 %v1917
    %v2121 = vpop.f32.mrf.mxu0
    %v2122 = vadd.f32 %v2034, %v2121
    %v2123 = vpop.f32.mrf.mxu0
    %v2124 = vpop.f32.mrf.mxu0
    %v2125 = vpop.f32.mrf.mxu0
    %2126 = vdwg.mxu0
    %v2127 = vpack.c.bf16 %v177, %v177
    %v2128 = vpack.c.bf16 %v180, %v180
    %v2129 = vld [vmem:[#allocation8 + $0x2e0] sm:$0xf]
    %v2130 = vld [vmem:[#allocation8 + $0x2e4] sm:$0xf]
    %v2131 = vld [vmem:[#allocation8 + $0x2e8] sm:$0xf]
    %v2132 = vld [vmem:[#allocation8 + $0x2ec] sm:$0xf]
    %v2133 = vld [vmem:[#allocation8 + $0x2f0] sm:$0xf]
    %v2134 = vld [vmem:[#allocation8 + $0x2f4] sm:$0xf]
    %v2135 = vld [vmem:[#allocation8 + $0x2f8] sm:$0xf]
    %v2136 = vld [vmem:[#allocation8 + $0x2fc] sm:$0xf]
    %v2137 = vld [vmem:[#allocation8 + $0x300] sm:$0xf]
    %v2138 = vld [vmem:[#allocation8 + $0x304] sm:$0xf]
    %v2139 = vld [vmem:[#allocation8 + $0x308] sm:$0xf]
    %v2140 = vld [vmem:[#allocation8 + $0x30c] sm:$0xf]
    %v2141 = vld [vmem:[#allocation8 + $0x310] sm:$0xf]
    %v2142 = vld [vmem:[#allocation8 + $0x314] sm:$0xf]
    %v2143 = vld [vmem:[#allocation8 + $0x318] sm:$0xf]
    %v2144 = vld [vmem:[#allocation8 + $0x31c] sm:$0xf]
    %v2147 = vunpack.c.l.b16 %v2127
    %v2148 = vunpack.c.l.b16 %v2128
    %v2149 = vrot.slane %v2148, 7
    %v2150 = vsel %vm271, %v2149, %v2147
    %v2151 = vpack.c.b16 %v2150, %v2150
    %v2169 = vunpack.c.l.b16 %v2129
    %v2170 = vunpack.c.l.b16 %v2130
    %v2171 = vunpack.c.l.b16 %v2131
    %v2172 = vunpack.c.l.b16 %v2132
    %v2173 = vunpack.c.l.b16 %v2133
    %v2174 = vunpack.c.l.b16 %v2134
    %v2175 = vunpack.c.l.b16 %v2135
    %v2176 = vunpack.c.l.b16 %v2136
    %v2177 = vunpack.c.l.b16 %v2137
    %v2178 = vunpack.c.l.b16 %v2138
    %v2179 = vunpack.c.l.b16 %v2139
    %v2180 = vunpack.c.l.b16 %v2140
    %v2181 = vunpack.c.l.b16 %v2141
    %v2182 = vunpack.c.l.b16 %v2142
    %v2183 = vunpack.c.l.b16 %v2143
    %v2184 = vunpack.c.l.b16 %v2144
    %v2185 = vpack.c.b16 %v2170, %v2169
    %v2186 = vpack.c.b16 %v2172, %v2171
    %v2187 = vpack.c.b16 %v2174, %v2173
    %v2188 = vpack.c.b16 %v2176, %v2175
    %v2189 = vpack.c.b16 %v2178, %v2177
    %v2190 = vpack.c.b16 %v2180, %v2179
    %v2191 = vpack.c.b16 %v2182, %v2181
    %v2192 = vpack.c.b16 %v2184, %v2183
    %2201 = vmatprep.subr.bf16.mxu0 0
    %2202 = vmatpush1.bf16.msra.mxu0 %v2192
    %2203 = vmatprep.subr.bf16.mxu0 0
    %2204 = vmatpush1.bf16.msra.mxu0 %v2191
    %2205 = vmatprep.subr.bf16.mxu0 0
    %2206 = vmatpush1.bf16.msra.mxu0 %v2190
    %2207 = vmatprep.subr.bf16.mxu0 0
    %2208 = vmatpush1.bf16.msra.mxu0 %v2189
    %2209 = vmatprep.subr.bf16.mxu0 0
    %2210 = vmatpush1.bf16.msra.mxu0 %v2188
    %2211 = vmatprep.subr.bf16.mxu0 0
    %2212 = vmatpush1.bf16.msra.mxu0 %v2187
    %2213 = vmatprep.subr.bf16.mxu0 0
    %2214 = vmatpush1.bf16.msra.mxu0 %v2186
    %2215 = vmatprep.subr.bf16.mxu0 0
    %2216 = vmatpush1.bf16.msra.mxu0 %v2185
    %2217 = vmatprep.subr.bf16.mxu0 0
    %2218 = vmatpush2.bf16.msra.mxu0 0
    %2219 = vmatprep.subr.bf16.mxu0 0
    %2220 = vmatpush2.bf16.msra.mxu0 0
    %2221 = vmatprep.subr.bf16.mxu0 0
    %2222 = vmatpush2.bf16.msra.mxu0 0
    %2223 = vmatprep.subr.bf16.mxu0 0
    %2224 = vmatpush2.bf16.msra.mxu0 0
    %2225 = vmatprep.subr.bf16.mxu0 0
    %2226 = vmatpush2.bf16.msra.mxu0 0
    %2227 = vmatprep.subr.bf16.mxu0 0
    %2228 = vmatpush2.bf16.msra.mxu0 0
    %2229 = vmatprep.subr.bf16.mxu0 0
    %2230 = vmatpush2.bf16.msra.mxu0 0
    %2231 = vmatprep.subr.bf16.mxu0 0
    %2232 = vmatpush2.bf16.msra.mxu0 0
    %2233 = vmatprep.mubr.bf16.mxu0 0
    %2234 = vmatmul.mubr.bf16.gmra.mxu0 %v2151
    %v2235 = vpop.f32.mrf.mxu0
    %v2236 = vadd.f32 0.0, %v2235
    %v2237 = vpop.f32.mrf.mxu0
    %v2238 = vpop.f32.mrf.mxu0
    %v2239 = vpop.f32.mrf.mxu0
    %2240 = vdwg.mxu0
    %v2241 = vadd.f32 %v2122, %v2236
    %v2242 = vld [vmem:[#allocation10 + $0x11] sm:$0x1]
    %v2243 = vlaneseq
    %v2244 = vshrl.u32 %v2243, 7
    %v2245 = vsub.s32 0, %v2244
    %v2246 = vrot.slane %v2242, %v2245
    %v2247 = vadd.f32 %v2241, %v2246
    %v2248 = vsel %vm1471, %v2247, 0.0
    %v2249 = vrot.slane %v2248, 4
    %v2250 = vadd.f32 %v2248, %v2249
    %v2251 = vrot.slane %v2250, 2
    %v2252 = vadd.f32 %v2250, %v2251
    %v2253 = vrot.slane %v2252, 1
    %v2254 = vadd.f32 %v2252, %v2253
    %v2255 = vmul.f32 %v2254, %v1479
    %v2256 = vsub.f32 %v2247, %v2255
    %v2257 = vmul.f32 %v2256, %v2256
    %v2258 = vsel %vm1471, %v2257, 0.0
    %v2259 = vrot.slane %v2258, 4
    %v2260 = vadd.f32 %v2258, %v2259
    %v2261 = vrot.slane %v2260, 2
    %v2262 = vadd.f32 %v2260, %v2261
    %v2263 = vrot.slane %v2262, 1
    %v2264 = vadd.f32 %v2262, %v2263
    %v2265 = vmul.f32 %v2264, %v1479
    %v2266 = vadd.f32 %v2265, 1e-05
    %v2267 = vrsqrt.pop %v2266
    %v2268 = vmul.f32 %v2256, %v2267
    %v2269 = vld [vmem:[#allocation10 + $0x12] sm:$0x1]
    %v2270 = vlaneseq
    %v2271 = vshrl.u32 %v2270, 7
    %v2272 = vsub.s32 0, %v2271
    %v2273 = vrot.slane %v2269, %v2272
    %v2274 = vmul.f32 %v2268, %v2273
    %v2275 = vld [vmem:[#allocation10 + $0x13] sm:$0x1]
    %v2276 = vlaneseq
    %v2277 = vshrl.u32 %v2276, 7
    %v2278 = vsub.s32 0, %v2277
    %v2279 = vrot.slane %v2275, %v2278
    %v2280 = vadd.f32 %v2274, %v2279
    %v2281 = vmax.f32 %v2280, 0.0
    %v2282 = vpack.c.bf16 %v2281, %v2281
    %v2283 = vld [vmem:[#allocation8 + $0x320] sm:$0xf]
    %v2284 = vld [vmem:[#allocation8 + $0x324] sm:$0xf]
    %v2285 = vld [vmem:[#allocation8 + $0x328] sm:$0xf]
    %v2286 = vld [vmem:[#allocation8 + $0x32c] sm:$0xf]
    %v2287 = vld [vmem:[#allocation8 + $0x330] sm:$0xf]
    %v2288 = vld [vmem:[#allocation8 + $0x334] sm:$0xf]
    %v2289 = vld [vmem:[#allocation8 + $0x338] sm:$0xf]
    %v2290 = vld [vmem:[#allocation8 + $0x33c] sm:$0xf]
    %v2291 = vld [vmem:[#allocation8 + $0x340] sm:$0xf]
    %v2292 = vld [vmem:[#allocation8 + $0x344] sm:$0xf]
    %v2293 = vld [vmem:[#allocation8 + $0x348] sm:$0xf]
    %v2294 = vld [vmem:[#allocation8 + $0x34c] sm:$0xf]
    %v2295 = vld [vmem:[#allocation8 + $0x350] sm:$0xf]
    %v2296 = vld [vmem:[#allocation8 + $0x354] sm:$0xf]
    %v2297 = vld [vmem:[#allocation8 + $0x358] sm:$0xf]
    %v2298 = vld [vmem:[#allocation8 + $0x35c] sm:$0xf]
    %v2299 = vld [vmem:[#allocation10 + $0x14] sm:$0x1]
    %v2300 = vlaneseq
    %v2301 = vshrl.u32 %v2300, 7
    %v2302 = vsub.s32 0, %v2301
    %v2303 = vrot.slane %v2299, %v2302
    %v2320 = vunpack.c.l.b16 %v2283
    %v2321 = vunpack.c.l.b16 %v2284
    %v2322 = vunpack.c.l.b16 %v2285
    %v2323 = vunpack.c.l.b16 %v2286
    %v2324 = vunpack.c.l.b16 %v2287
    %v2325 = vunpack.c.l.b16 %v2288
    %v2326 = vunpack.c.l.b16 %v2289
    %v2327 = vunpack.c.l.b16 %v2290
    %v2328 = vunpack.c.l.b16 %v2291
    %v2329 = vunpack.c.l.b16 %v2292
    %v2330 = vunpack.c.l.b16 %v2293
    %v2331 = vunpack.c.l.b16 %v2294
    %v2332 = vunpack.c.l.b16 %v2295
    %v2333 = vunpack.c.l.b16 %v2296
    %v2334 = vunpack.c.l.b16 %v2297
    %v2335 = vunpack.c.l.b16 %v2298
    %v2336 = vpack.c.b16 %v2321, %v2320
    %v2337 = vpack.c.b16 %v2323, %v2322
    %v2338 = vpack.c.b16 %v2325, %v2324
    %v2339 = vpack.c.b16 %v2327, %v2326
    %v2340 = vpack.c.b16 %v2329, %v2328
    %v2341 = vpack.c.b16 %v2331, %v2330
    %v2342 = vpack.c.b16 %v2333, %v2332
    %v2343 = vpack.c.b16 %v2335, %v2334
    %2352 = vmatprep.subr.bf16.mxu0 0
    %2353 = vmatpush1.bf16.msra.mxu0 %v2343
    %2354 = vmatprep.subr.bf16.mxu0 0
    %2355 = vmatpush1.bf16.msra.mxu0 %v2342
    %2356 = vmatprep.subr.bf16.mxu0 0
    %2357 = vmatpush1.bf16.msra.mxu0 %v2341
    %2358 = vmatprep.subr.bf16.mxu0 0
    %2359 = vmatpush1.bf16.msra.mxu0 %v2340
    %2360 = vmatprep.subr.bf16.mxu0 0
    %2361 = vmatpush1.bf16.msra.mxu0 %v2339
    %2362 = vmatprep.subr.bf16.mxu0 0
    %2363 = vmatpush1.bf16.msra.mxu0 %v2338
    %2364 = vmatprep.subr.bf16.mxu0 0
    %2365 = vmatpush1.bf16.msra.mxu0 %v2337
    %2366 = vmatprep.subr.bf16.mxu0 0
    %2367 = vmatpush1.bf16.msra.mxu0 %v2336
    %2368 = vmatprep.subr.bf16.mxu0 0
    %2369 = vmatpush2.bf16.msra.mxu0 0
    %2370 = vmatprep.subr.bf16.mxu0 0
    %2371 = vmatpush2.bf16.msra.mxu0 0
    %2372 = vmatprep.subr.bf16.mxu0 0
    %2373 = vmatpush2.bf16.msra.mxu0 0
    %2374 = vmatprep.subr.bf16.mxu0 0
    %2375 = vmatpush2.bf16.msra.mxu0 0
    %2376 = vmatprep.subr.bf16.mxu0 0
    %2377 = vmatpush2.bf16.msra.mxu0 0
    %2378 = vmatprep.subr.bf16.mxu0 0
    %2379 = vmatpush2.bf16.msra.mxu0 0
    %2380 = vmatprep.subr.bf16.mxu0 0
    %2381 = vmatpush2.bf16.msra.mxu0 0
    %2382 = vmatprep.subr.bf16.mxu0 0
    %2383 = vmatpush2.bf16.msra.mxu0 0
    %2384 = vmatprep.mubr.bf16.mxu0 0
    %2385 = vmatmul.mubr.bf16.gmra.mxu0 %v2282
    %v2386 = vpop.f32.mrf.mxu0
    %v2387 = vadd.f32 %v2303, %v2386
    %v2388 = vpop.f32.mrf.mxu0
    %v2389 = vpop.f32.mrf.mxu0
    %v2390 = vpop.f32.mrf.mxu0
    %2391 = vdwg.mxu0
    %2392 = vst [vmem:[#allocation11] sm:$0x3] %v2387
    // Predicated region
    $region46: #{information_detection.1} parent=1 // pred_check
      _
    $region47: #{information_detection.1} parent=1 // pred_check_branch
      %2394 = sbr.rel (0) target = $region49
    $region48: #{information_detection.1} parent=1 // pred_region
      %s2396 = ssub.s32 32, 32
      %2397 = vsyncadd [#allocation4], %s2396
      %s2399 = sshll.u32 [#allocation11], 4
      %s2400 = int_to_ptr.vmem [resolvable:$true] %s2399
      %2402 = dma.vmem_to_hbm [thread:$0]  %s2400, 32, %s6, [#allocation4]
    $region49: #{information_detection.1} parent=1 // pred_fallthru
      _
    // Predicated region
    $region50: #{information_detection.1} parent=1 // pred_check
      _
    $region51: #{information_detection.1} parent=1 // pred_check_branch
      %2404 = sbr.rel (0) target = $region53
    $region52: #{information_detection.1} parent=1 // pred_region
      %2405 = dma.done [#allocation4], 32
    $region53: #{information_detection.1} parent=1 // pred_fallthru
      _
    %2406 = vsyncpa [#allocation3], 1
    %2407 = vsyncpa [#allocation6], 1
    %2408 = vsyncpa [#allocation9], 1
    %2409 = vsyncpa [#allocation4], 1

</llo_original>
